<compile_context>
chip_gen: v7x
topology: tpu7x:2x2x1
jax: 0.10.0
libtpu: 0.0.40
codegen_flags: <defaults>
</compile_context>

<pallas_src>
import functools

import jax
import jax.numpy as jnp
from jax import lax
from jax.experimental import pallas as pl
from jax.experimental.pallas import tpu as pltpu


def _softplus(x):
    # Branch-free, numerically stable softplus. Matches torch.nn.Softplus
    # (beta=1, threshold=20): for x > 20, log1p(exp(-x)) < 2.1e-9.
    return jnp.maximum(x, 0.0) + jnp.log1p(jnp.exp(-jnp.abs(x)))


def _mlp_kernel(num_hidden_layers, use_bf16,
                x_ref, lb_ref, ub_ref,
                w0_ref, b0_ref,
                wh_ref, bh_ref,
                wl_ref, bl_ref,
                o_ref):
    # Batch-on-lanes layout: features on sublanes, batch on lanes.
    x = x_ref[...]                                   # (2, BN)  raw (unnormalized)
    lb = lb_ref[...]                                 # (2, 1)
    ub = ub_ref[...]                                 # (2, 1)
    w0 = w0_ref[...]                                 # (H, 2)  PyTorch (out, in) layout
    b0 = b0_ref[...]                                 # (H, 1)

    # Fold the affine normalization  xn = x*s - (lb*s + 1),  s = 2/(ub - lb),
    # into the first layer:
    #   W0 @ xn + b0 = (W0 * s^T) @ x + (b0 - W0 @ (lb*s + 1))
    # Done once per grid step on tiny (H,2)/(2,1) tiles -> zero (2,BN) divides/EUP work.
    s = 2.0 / (ub - lb)                              # (2, 1)
    t = lb * s + 1.0                                 # (2, 1)
    w0c0, w0c1 = w0[:, 0:1], w0[:, 1:2]              # (H, 1) each
    w00 = w0c0 * s[0:1, :]                           # (H, 1)
    w01 = w0c1 * s[1:2, :]                           # (H, 1)
    b0e = b0 - (w0c0 * t[0:1, :] + w0c1 * t[1:2, :]) # (H, 1)

    # First layer on the VPU (K=2 would waste the MXU): two broadcast FMAs.
    h = _softplus(w00 * x[0:1, :] + w01 * x[1:2, :] + b0e)        # (H, BN)

    mm_dtype = jnp.bfloat16 if use_bf16 else jnp.float32

    def apply_hidden(w, b, hh):
        # (H, H) @ (H, BN) on the MXU, f32 accumulation.
        z = jnp.dot(w.astype(mm_dtype), hh.astype(mm_dtype),
                    preferred_element_type=jnp.float32) + b
        return _softplus(z)

    if num_hidden_layers <= 4:
        # Shallow MLPs: static unroll is fine (small live-range footprint).
        for i in range(num_hidden_layers):
            h = apply_hidden(wh_ref[i], bh_ref[i], h)
    else:
        # Deeper MLPs: fori_loop bounds vreg live ranges (avoids spills) while
        # unroll=True keeps LLO scheduler visibility.
        h = lax.fori_loop(
            0, num_hidden_layers,
            lambda i, hh: apply_hidden(wh_ref[i], bh_ref[i], hh),
            h, unroll=True)

    # Output layer (N=1) on VPU + cross-sublane reduce (XLU); lane-dense result.
    out = jnp.sum(h * wl_ref[...], axis=0, keepdims=True) + bl_ref[...]   # (1, BN)
    o_ref[...] = out.astype(o_ref.dtype)


def _pick_block_n(n, desired):
    """Largest lane-dense (multiple-of-128) tile <= desired, keeping the grid at
    >= 2 steps whenever the (padded) batch allows it (v7x: shard across both TCs)."""
    bn = max(128, (desired // 128) * 128)
    n128 = pl.cdiv(n, 128) * 128
    bn = min(bn, n128)
    if n128 >= 256:
        bn = min(bn, ((n128 // 2) // 128) * 128)
    return max(bn, 128)


def mlp_forward(x, lb, ub, params, *, block_n=512, use_bf16=False):
    """x: (N, 2) f32; lb, ub: (1, 2) f32; params: dict (see init_params)."""
    n = x.shape[0]
    H = params["w0"].shape[0]
    L = params["wh"].shape[0]

    bn = _pick_block_n(n, block_n)
    n_pad = pl.cdiv(n, bn) * bn
    grid = n_pad // bn

    # Transpose once in the wrapper so the kernel sees batch on lanes; pad the batch
    # to a tile multiple (padding is sliced off after the call).
    xT = x.astype(jnp.float32).T                     # (2, N)
    if n_pad != n:
        xT = jnp.pad(xT, ((0, 0), (0, n_pad - n)))
    lbT = lb.reshape(1, 2).astype(jnp.float32).T     # (2, 1)
    ubT = ub.reshape(1, 2).astype(jnp.float32).T     # (2, 1)

    kernel = functools.partial(_mlp_kernel, L, use_bf16)

    # Advisory cost hint so XLA schedules this tiny custom call sensibly in a larger graph.
    flops = 2 * n_pad * (2 * H + L * H * H + H)
    transcendentals = 2 * (L + 1) * H * n_pad        # exp + log per softplus element
    bytes_accessed = (xT.size + n_pad) * 4 + 4 * sum(int(v.size) for v in params.values())

    out = pl.pallas_call(
        kernel,
        out_shape=jax.ShapeDtypeStruct((1, n_pad), jnp.float32),
        grid_spec=pltpu.PrefetchScalarGridSpec(
            num_scalar_prefetch=0,
            grid=(grid,),
            in_specs=[
                pl.BlockSpec((2, bn), lambda i: (0, i)),        # x tile (transposed)
                pl.BlockSpec((2, 1), lambda i: (0, 0)),         # lb
                pl.BlockSpec((2, 1), lambda i: (0, 0)),         # ub
                pl.BlockSpec((H, 2), lambda i: (0, 0)),         # first layer W (out, in)
                pl.BlockSpec((H, 1), lambda i: (0, 0)),         # first layer b
                pl.BlockSpec((L, H, H), lambda i: (0, 0, 0)),   # stacked hidden W
                pl.BlockSpec((L, H, 1), lambda i: (0, 0, 0)),   # stacked hidden b
                pl.BlockSpec((H, 1), lambda i: (0, 0)),         # last layer W^T (in, 1)
                pl.BlockSpec((1, 1), lambda i: (0, 0)),         # last layer b
            ],
            out_specs=pl.BlockSpec((1, bn), lambda i: (0, i)),  # lane-dense output
        ),
        compiler_params=pltpu.CompilerParams(
            dimension_semantics=("parallel",)),
        cost_estimate=pl.CostEstimate(
            flops=flops,
            transcendentals=transcendentals,
            bytes_accessed=bytes_accessed),
    )(xT, lbT, ubT,
      params["w0"], params["b0"],
      params["wh"], params["bh"],
      params["wl"], params["bl"])

    return out[:, :n].reshape(n, 1)


def init_params(key, num_hidden_layers, num_neurons_per_layer):
    """Deterministic init mimicking nn.Linear's U(-1/sqrt(fan_in), 1/sqrt(fan_in)).

    first/hidden weights in PyTorch layout (out_features, in_features), hidden layers
    stacked; the last layer is stored transposed: wl = last_fc.weight.T (in, 1).
    """
    H = num_neurons_per_layer
    L = num_hidden_layers
    ks = jax.random.split(key, 6)

    def u(k, shape, fan_in):
        bound = 1.0 / jnp.sqrt(float(fan_in))
        return jax.random.uniform(k, shape, jnp.float32, -bound, bound)

    return {
        "w0": u(ks[0], (H, 2), 2),          # first_layer.weight  (out, in)
        "b0": u(ks[1], (H, 1), 2),          # first_layer.bias    (out, 1)
        "wh": u(ks[2], (L, H, H), H),       # hidden_i.weight     (out, in), stacked
        "bh": u(ks[3], (L, H, 1), H),       # hidden_i.bias       (out, 1), stacked
        "wl": u(ks[4], (H, 1), H),          # last_fc.weight^T    (in, 1)
        "bl": u(ks[5], (1, 1), H),          # last_fc.bias
    }


def reference_forward(x, lb, ub, params):
    h = 2.0 * (x - lb) / (ub - lb) - 1.0
    h = jax.nn.softplus(h @ params["w0"].T + params["b0"][:, 0])
    for i in range(params["wh"].shape[0]):
        h = jax.nn.softplus(h @ params["wh"][i].T + params["bh"][i, :, 0])
    return h @ params["wl"] + params["bl"][0]


if __name__ == "__main__":
    key = jax.random.PRNGKey(0)
    k_x, k_p = jax.random.split(key)

    N = 1024                  # batch of (t, x) collocation points
    H = 32                    # num_neurons_per_layer
    L = 2                     # num_hidden_layers

    # Burgers domain bounds: t in [0, 1], x in [-1, 1]
    lb = jnp.array([[0.0, -1.0]], dtype=jnp.float32)
    ub = jnp.array([[1.0, 1.0]], dtype=jnp.float32)

    x = jax.random.uniform(k_x, (N, 2), jnp.float32,
                           minval=jnp.array([0.0, -1.0]),
                           maxval=jnp.array([1.0, 1.0]))
    params = init_params(k_p, L, H)

    # block_n=512 -> 2 grid steps at N=1024 (both v7x TCs busy, minimal step overhead).
    out = mlp_forward(x, lb, ub, params, block_n=512)
    out = jax.block_until_ready(out)

    ref = reference_forward(x, lb, ub, params)
    assert out.shape == (N, 1)
    max_err = float(jnp.max(jnp.abs(out - ref)))
    assert jnp.allclose(out, ref, atol=1e-4, rtol=1e-4), max_err

    # TODO(synk): forward-only kernel; PINN training (du/dt, du/dx, d2u/dx2) would need
    # a custom VJP/JVP — jax.grad through this pallas_call is not defined here.
    print("KERNEL_OK")
</pallas_src>

<mosaic_0001>
module attributes {stable_mosaic.version = 11 : i64} {
  func.func @_mlp_kernel(%arg0: i32, %arg1: memref<2x512xf32, #tpu.memory_space<vmem>>, %arg2: memref<2x1xf32, #tpu.memory_space<vmem>>, %arg3: memref<2x1xf32, #tpu.memory_space<vmem>>, %arg4: memref<32x2xf32, #tpu.memory_space<vmem>>, %arg5: memref<32x1xf32, #tpu.memory_space<vmem>>, %arg6: memref<2x32x32xf32, #tpu.memory_space<vmem>>, %arg7: memref<2x32x1xf32, #tpu.memory_space<vmem>>, %arg8: memref<32x1xf32, #tpu.memory_space<vmem>>, %arg9: memref<1x1xf32, #tpu.memory_space<vmem>>, %arg10: memref<1x512xf32, #tpu.memory_space<vmem>>) attributes {dimension_semantics = [#tpu.dimension_semantics<parallel>], iteration_bounds = array<i64: 2>, scalar_prefetch = 0 : i64, scratch_operands = 0 : i64, tpu.core_type = #tpu.core_type<tc>, window_params = [{transform_indices = @transform_0, window_bounds = array<i64: 2, 512>}, {pipeline_mode = #tpu.pipeline_mode<synchronous>, transform_indices = @transform_1, window_bounds = array<i64: 2, 1>}, {pipeline_mode = #tpu.pipeline_mode<synchronous>, transform_indices = @transform_2, window_bounds = array<i64: 2, 1>}, {pipeline_mode = #tpu.pipeline_mode<synchronous>, transform_indices = @transform_3, window_bounds = array<i64: 32, 2>}, {pipeline_mode = #tpu.pipeline_mode<synchronous>, transform_indices = @transform_4, window_bounds = array<i64: 32, 1>}, {pipeline_mode = #tpu.pipeline_mode<synchronous>, transform_indices = @transform_5, window_bounds = array<i64: 2, 32, 32>}, {pipeline_mode = #tpu.pipeline_mode<synchronous>, transform_indices = @transform_6, window_bounds = array<i64: 2, 32, 1>}, {pipeline_mode = #tpu.pipeline_mode<synchronous>, transform_indices = @transform_7, window_bounds = array<i64: 32, 1>}, {pipeline_mode = #tpu.pipeline_mode<synchronous>, transform_indices = @transform_8, window_bounds = array<i64: 1, 1>}, {transform_indices = @transform_9, window_bounds = array<i64: 1, 512>}]} {
    %c0 = arith.constant 0 : index
    %c0_0 = arith.constant 0 : index
    %0 = vector.load %arg1[%c0, %c0_0] : memref<2x512xf32, #tpu.memory_space<vmem>>, vector<2x512xf32>
    %c0_1 = arith.constant 0 : index
    %c0_2 = arith.constant 0 : index
    %1 = vector.load %arg2[%c0_1, %c0_2] : memref<2x1xf32, #tpu.memory_space<vmem>>, vector<2x1xf32>
    %c0_3 = arith.constant 0 : index
    %c0_4 = arith.constant 0 : index
    %2 = vector.load %arg3[%c0_3, %c0_4] : memref<2x1xf32, #tpu.memory_space<vmem>>, vector<2x1xf32>
    %c0_5 = arith.constant 0 : index
    %c0_6 = arith.constant 0 : index
    %3 = vector.load %arg4[%c0_5, %c0_6] : memref<32x2xf32, #tpu.memory_space<vmem>>, vector<32x2xf32>
    %c0_7 = arith.constant 0 : index
    %c0_8 = arith.constant 0 : index
    %4 = vector.load %arg5[%c0_7, %c0_8] : memref<32x1xf32, #tpu.memory_space<vmem>>, vector<32x1xf32>
    %5 = arith.subf %2, %1 : vector<2x1xf32>
    %cst = arith.constant 2.000000e+00 : f32
    %6 = vector.broadcast %cst : f32 to vector<2x1xf32>
    %7 = arith.divf %6, %5 : vector<2x1xf32>
    %8 = arith.mulf %1, %7 : vector<2x1xf32>
    %cst_9 = arith.constant 1.000000e+00 : f32
    %9 = vector.broadcast %cst_9 : f32 to vector<2x1xf32>
    %10 = arith.addf %8, %9 : vector<2x1xf32>
    %11 = vector.extract_strided_slice %3 {offsets = [0, 0], sizes = [32, 1], strides = [1, 1]} : vector<32x2xf32> to vector<32x1xf32>
    %12 = vector.extract_strided_slice %3 {offsets = [0, 1], sizes = [32, 1], strides = [1, 1]} : vector<32x2xf32> to vector<32x1xf32>
    %13 = vector.extract_strided_slice %7 {offsets = [0, 0], sizes = [1, 1], strides = [1, 1]} : vector<2x1xf32> to vector<1x1xf32>
    %14 = vector.broadcast %13 : vector<1x1xf32> to vector<32x1xf32>
    %15 = arith.mulf %11, %14 : vector<32x1xf32>
    %16 = vector.extract_strided_slice %7 {offsets = [1, 0], sizes = [1, 1], strides = [1, 1]} : vector<2x1xf32> to vector<1x1xf32>
    %17 = vector.broadcast %16 : vector<1x1xf32> to vector<32x1xf32>
    %18 = arith.mulf %12, %17 : vector<32x1xf32>
    %19 = vector.extract_strided_slice %10 {offsets = [0, 0], sizes = [1, 1], strides = [1, 1]} : vector<2x1xf32> to vector<1x1xf32>
    %20 = vector.broadcast %19 : vector<1x1xf32> to vector<32x1xf32>
    %21 = arith.mulf %11, %20 : vector<32x1xf32>
    %22 = vector.extract_strided_slice %10 {offsets = [1, 0], sizes = [1, 1], strides = [1, 1]} : vector<2x1xf32> to vector<1x1xf32>
    %23 = vector.broadcast %22 : vector<1x1xf32> to vector<32x1xf32>
    %24 = arith.mulf %12, %23 : vector<32x1xf32>
    %25 = arith.addf %21, %24 : vector<32x1xf32>
    %26 = arith.subf %4, %25 : vector<32x1xf32>
    %27 = vector.extract_strided_slice %0 {offsets = [0, 0], sizes = [1, 512], strides = [1, 1]} : vector<2x512xf32> to vector<1x512xf32>
    %28 = vector.broadcast %15 : vector<32x1xf32> to vector<32x512xf32>
    %29 = vector.broadcast %27 : vector<1x512xf32> to vector<32x512xf32>
    %30 = arith.mulf %28, %29 : vector<32x512xf32>
    %31 = vector.extract_strided_slice %0 {offsets = [1, 0], sizes = [1, 512], strides = [1, 1]} : vector<2x512xf32> to vector<1x512xf32>
    %32 = vector.broadcast %18 : vector<32x1xf32> to vector<32x512xf32>
    %33 = vector.broadcast %31 : vector<1x512xf32> to vector<32x512xf32>
    %34 = arith.mulf %32, %33 : vector<32x512xf32>
    %35 = arith.addf %30, %34 : vector<32x512xf32>
    %36 = vector.broadcast %26 : vector<32x1xf32> to vector<32x512xf32>
    %37 = arith.addf %35, %36 : vector<32x512xf32>
    %cst_10 = arith.constant 0.000000e+00 : f32
    %38 = vector.broadcast %cst_10 : f32 to vector<32x512xf32>
    %39 = arith.maximumf %37, %38 : vector<32x512xf32>
    %40 = math.absf %37 : vector<32x512xf32>
    %cst_11 = arith.constant 0.000000e+00 : f32
    %41 = vector.broadcast %cst_11 : f32 to vector<32x512xf32>
    %42 = arith.subf %41, %40 : vector<32x512xf32>
    %43 = math.exp %42 : vector<32x512xf32>
    %44 = math.log1p %43 : vector<32x512xf32>
    %45 = arith.addf %39, %44 : vector<32x512xf32>
    %c0_12 = arith.constant 0 : index
    %c0_13 = arith.constant 0 : index
    %c0_14 = arith.constant 0 : index
    %46 = vector.load %arg6[%c0_12, %c0_13, %c0_14] : memref<2x32x32xf32, #tpu.memory_space<vmem>>, vector<1x32x32xf32>
    %47 = vector.shape_cast %46 : vector<1x32x32xf32> to vector<32x32xf32>
    %c0_15 = arith.constant 0 : index
    %c0_16 = arith.constant 0 : index
    %c0_17 = arith.constant 0 : index
    %48 = vector.load %arg7[%c0_15, %c0_16, %c0_17] : memref<2x32x1xf32, #tpu.memory_space<vmem>>, vector<1x32x1xf32>
    %49 = vector.shape_cast %48 : vector<1x32x1xf32> to vector<32x1xf32>
    %cst_18 = arith.constant dense<0.000000e+00> : vector<32x512xf32>
    %50 = tpu.matmul %47, %45, %cst_18 {dimension_numbers = #tpu.dot_dimension_numbers<[1], [0], [0], [1], [0, 0, 1, 1], [], []>} : vector<32x32xf32>, vector<32x512xf32>, vector<32x512xf32> -> vector<32x512xf32>
    %51 = vector.broadcast %49 : vector<32x1xf32> to vector<32x512xf32>
    %52 = arith.addf %50, %51 : vector<32x512xf32>
    %cst_19 = arith.constant 0.000000e+00 : f32
    %53 = vector.broadcast %cst_19 : f32 to vector<32x512xf32>
    %54 = arith.maximumf %52, %53 : vector<32x512xf32>
    %55 = math.absf %52 : vector<32x512xf32>
    %cst_20 = arith.constant 0.000000e+00 : f32
    %56 = vector.broadcast %cst_20 : f32 to vector<32x512xf32>
    %57 = arith.subf %56, %55 : vector<32x512xf32>
    %58 = math.exp %57 : vector<32x512xf32>
    %59 = math.log1p %58 : vector<32x512xf32>
    %60 = arith.addf %54, %59 : vector<32x512xf32>
    %c1 = arith.constant 1 : index
    %c0_21 = arith.constant 0 : index
    %c0_22 = arith.constant 0 : index
    %61 = vector.load %arg6[%c1, %c0_21, %c0_22] : memref<2x32x32xf32, #tpu.memory_space<vmem>>, vector<1x32x32xf32>
    %62 = vector.shape_cast %61 : vector<1x32x32xf32> to vector<32x32xf32>
    %c1_23 = arith.constant 1 : index
    %c0_24 = arith.constant 0 : index
    %c0_25 = arith.constant 0 : index
    %63 = vector.load %arg7[%c1_23, %c0_24, %c0_25] : memref<2x32x1xf32, #tpu.memory_space<vmem>>, vector<1x32x1xf32>
    %64 = vector.shape_cast %63 : vector<1x32x1xf32> to vector<32x1xf32>
    %cst_26 = arith.constant dense<0.000000e+00> : vector<32x512xf32>
    %65 = tpu.matmul %62, %60, %cst_26 {dimension_numbers = #tpu.dot_dimension_numbers<[1], [0], [0], [1], [0, 0, 1, 1], [], []>} : vector<32x32xf32>, vector<32x512xf32>, vector<32x512xf32> -> vector<32x512xf32>
    %66 = vector.broadcast %64 : vector<32x1xf32> to vector<32x512xf32>
    %67 = arith.addf %65, %66 : vector<32x512xf32>
    %cst_27 = arith.constant 0.000000e+00 : f32
    %68 = vector.broadcast %cst_27 : f32 to vector<32x512xf32>
    %69 = arith.maximumf %67, %68 : vector<32x512xf32>
    %70 = math.absf %67 : vector<32x512xf32>
    %cst_28 = arith.constant 0.000000e+00 : f32
    %71 = vector.broadcast %cst_28 : f32 to vector<32x512xf32>
    %72 = arith.subf %71, %70 : vector<32x512xf32>
    %73 = math.exp %72 : vector<32x512xf32>
    %74 = math.log1p %73 : vector<32x512xf32>
    %75 = arith.addf %69, %74 : vector<32x512xf32>
    %c0_29 = arith.constant 0 : index
    %c0_30 = arith.constant 0 : index
    %76 = vector.load %arg8[%c0_29, %c0_30] : memref<32x1xf32, #tpu.memory_space<vmem>>, vector<32x1xf32>
    %77 = vector.broadcast %76 : vector<32x1xf32> to vector<32x512xf32>
    %78 = arith.mulf %75, %77 : vector<32x512xf32>
    %cst_31 = arith.constant dense<0.000000e+00> : vector<512xf32>
    %79 = vector.multi_reduction <add>, %78, %cst_31 [0] : vector<32x512xf32> to vector<512xf32>
    %80 = vector.shape_cast %79 : vector<512xf32> to vector<1x512xf32>
    %c0_32 = arith.constant 0 : index
    %c0_33 = arith.constant 0 : index
    %81 = vector.load %arg9[%c0_32, %c0_33] : memref<1x1xf32, #tpu.memory_space<vmem>>, vector<1x1xf32>
    %82 = vector.broadcast %81 : vector<1x1xf32> to vector<1x512xf32>
    %83 = arith.addf %80, %82 : vector<1x512xf32>
    %c0_34 = arith.constant 0 : index
    %c0_35 = arith.constant 0 : index
    %84 = vector.load %arg10[%c0_34, %c0_35] : memref<1x512xf32, #tpu.memory_space<vmem>>, vector<1x512xf32>
    tpu.vector_store %arg10[%c0_34, %c0_35], %83 {strides = array<i32>} : memref<1x512xf32, #tpu.memory_space<vmem>>, vector<1x512xf32>,
    return
  }
  func.func @transform_0(%arg0: i32) -> (i32, i32) {
    %c0_i32 = arith.constant 0 : i32
    %c0_i32_0 = arith.constant 0 : i32
    return %c0_i32, %arg0 : i32, i32
  }
  func.func @transform_1(%arg0: i32) -> (i32, i32) {
    %c0_i32 = arith.constant 0 : i32
    %c0_i32_0 = arith.constant 0 : i32
    %c0_i32_1 = arith.constant 0 : i32
    return %c0_i32, %c0_i32_0 : i32, i32
  }
  func.func @transform_2(%arg0: i32) -> (i32, i32) {
    %c0_i32 = arith.constant 0 : i32
    %c0_i32_0 = arith.constant 0 : i32
    %c0_i32_1 = arith.constant 0 : i32
    return %c0_i32, %c0_i32_0 : i32, i32
  }
  func.func @transform_3(%arg0: i32) -> (i32, i32) {
    %c0_i32 = arith.constant 0 : i32
    %c0_i32_0 = arith.constant 0 : i32
    %c0_i32_1 = arith.constant 0 : i32
    return %c0_i32, %c0_i32_0 : i32, i32
  }
  func.func @transform_4(%arg0: i32) -> (i32, i32) {
    %c0_i32 = arith.constant 0 : i32
    %c0_i32_0 = arith.constant 0 : i32
    %c0_i32_1 = arith.constant 0 : i32
    return %c0_i32, %c0_i32_0 : i32, i32
  }
  func.func @transform_5(%arg0: i32) -> (i32, i32, i32) {
    %c0_i32 = arith.constant 0 : i32
    %c0_i32_0 = arith.constant 0 : i32
    %c0_i32_1 = arith.constant 0 : i32
    %c0_i32_2 = arith.constant 0 : i32
    return %c0_i32, %c0_i32_0, %c0_i32_1 : i32, i32, i32
  }
  func.func @transform_6(%arg0: i32) -> (i32, i32, i32) {
    %c0_i32 = arith.constant 0 : i32
    %c0_i32_0 = arith.constant 0 : i32
    %c0_i32_1 = arith.constant 0 : i32
    %c0_i32_2 = arith.constant 0 : i32
    return %c0_i32, %c0_i32_0, %c0_i32_1 : i32, i32, i32
  }
  func.func @transform_7(%arg0: i32) -> (i32, i32) {
    %c0_i32 = arith.constant 0 : i32
    %c0_i32_0 = arith.constant 0 : i32
    %c0_i32_1 = arith.constant 0 : i32
    return %c0_i32, %c0_i32_0 : i32, i32
  }
  func.func @transform_8(%arg0: i32) -> (i32, i32) {
    %c0_i32 = arith.constant 0 : i32
    %c0_i32_0 = arith.constant 0 : i32
    %c0_i32_1 = arith.constant 0 : i32
    return %c0_i32, %c0_i32_0 : i32, i32
  }
  func.func @transform_9(%arg0: i32) -> (i32, i32) {
    %c0_i32 = arith.constant 0 : i32
    %c0_i32_0 = arith.constant 0 : i32
    return %c0_i32, %arg0 : i32, i32
  }
}

</mosaic_0001>

<llo_original>
// kernel: tpu_custom_call.1
$region0: #{tpu_custom_call.1}
  #allocation0 [shape = 'u32[]', space=smem, size = 0x4, offset = 0x4, fixed_abs, tag = 'smem constant byte address 0x4 - core index']
  #allocation1 [shape = 'u32[144,128]{1,0:T(1,128)}', space=vmem, size = 0x12000, scoped, tag = 'internal scratch']
  #allocation2 [shape = 'f32[1,1]{1,0:T(1,128)S(1)}', space=vmem, size = 0x200, scoped, tag = 'scoped memory for tpu_custom_call.1']
  %s0 = inlined_call_operand.vmem [shape: f32[2,1024], index: 0, kind: input, shape index: {}]
  %s1 = inlined_call_operand.vmem [shape: f32[2,1], index: 1, kind: input, shape index: {}]
  %s2 = inlined_call_operand.vmem [shape: f32[2,1], index: 2, kind: input, shape index: {}]
  %s3 = inlined_call_operand.vmem [shape: f32[32,2], index: 3, kind: input, shape index: {}]
  %s4 = inlined_call_operand.vmem [shape: f32[32,1], index: 4, kind: input, shape index: {}]
  %s5 = inlined_call_operand.vmem [shape: f32[2,32,32], index: 5, kind: input, shape index: {}]
  %s6 = inlined_call_operand.vmem [shape: f32[2,32,1], index: 6, kind: input, shape index: {}]
  %s7 = inlined_call_operand.vmem [shape: f32[32,1], index: 7, kind: input, shape index: {}]
  %s8 = inlined_call_operand.<no memory space> [shape: f32[1,1], index: 8, kind: input, shape index: {}]
  %s9 = inlined_call_operand.hbm [shape: f32[1,1024], index: 9, kind: output, shape index: {}]
  %s10 = sld [smem:[#allocation0]]
  $region69: #{tpu_custom_call.1} parent=0
    _
  %s12 = ssub.s32 1, %s10
  %s13 = scalar_select 0, %s12, %s10
  %v14 = vstv %s8
  %15 = vst [vmem:[#allocation2] sm:$0x1] %v14
  $region1: #{tpu_custom_call.1} parent=0
    #allocation3 [shape = 'u8[4096]{0}', space=vmem, size = 0x1000, scoped, tag = 'output window, operand 0']
    #allocation4 [shape = 's32[2]{0}', space=sflag, size = 0x8, scoped, tag = 'scoped memory for tpu_custom_call.1']
    %16 = vsyncpa [#allocation4], 0
    %s17 = scalar_lea.sflag [#allocation4], 1
    %18 = vsyncpa %s17, 0
    loop: start=0, step=1, limit=4
    $region2: #{tpu_custom_call.1} parent=1 // loop_pre_header
      _
    $region3: #{tpu_custom_call.1} parent=1 // loop_header
      %s20 = sphi 0, %s24
      %p21 = scmp.ge.s32.totalorder %s20, 4
      %s30 = sphi 0, %s32
      %s33 = sphi 0, %s30
      %s34 = sphi 0, %s33
      %s50 = sphi 0, %s34
      %s54 = sphi 0, %s54
      %s56 = sphi 0, %s54
      %s57 = sphi 0, %s56
      %s71 = sphi 0, %s57
      %s75 = sphi 0, %s75
      %s77 = sphi 0, %s75
      %s78 = sphi 0, %s77
      %s92 = sphi 0, %s78
      %s96 = sphi 0, %s96
      %s98 = sphi 0, %s96
      %s99 = sphi 0, %s98
      %s113 = sphi 0, %s99
      %s117 = sphi 0, %s117
      %s119 = sphi 0, %s117
      %s120 = sphi 0, %s119
      %s134 = sphi 0, %s120
      %s138 = sphi 0, %s138
      %s140 = sphi 0, %s138
      %s141 = sphi 0, %s140
      %s155 = sphi 0, %s141
      %s159 = sphi 0, %s159
      %s161 = sphi 0, %s159
      %s162 = sphi 0, %s161
      %s176 = sphi 0, %s162
      %s180 = sphi 0, %s180
      %s182 = sphi 0, %s180
      %s183 = sphi 0, %s182
      %s197 = sphi 0, %s183
      %s201 = sphi 0, %s201
      %s203 = sphi 0, %s201
      %s204 = sphi 0, %s203
      %s218 = sphi 0, %s204
      %s224 = sphi 0, %s226
      %s227 = sphi 0, %s224
      %s228 = sphi 0, %s227
      %s244 = sphi 0, %s228
    $region4: #{tpu_custom_call.1} parent=1 // loop_header_branch
      %23 = sbr.rel (%p21) target = $region8
    $region5: #{tpu_custom_call.1} parent=1 // loop_body
      %s25 = ssub.s32 %s20, 1
      %s26 = ssub.s32 %s20, 2
      %s27 = sadd.s32 %s20, 1
      %s28 = ssub.s32 %s20, %s27
      %p29 = scmp.eq.s32.totalorder %s28, 0
      %s31 = sadd.s32 %s30, 1
      %s32 = scalar_select %p29, %s30, %s31
      %p35 = pneg %p29
      %p36 = scmp.eq.s32.totalorder %s20, 1
      %p37 = por %p35, %p36
      %p38 = scmp.ne.s32.totalorder %s30, %s33
      %p39 = scmp.eq.s32.totalorder %s20, 0
      %p40 = por %p38, %p39
      %p41 = scmp.ne.s32.totalorder %s30, %s33
      %p42 = scmp.eq.s32.totalorder %s25, 1
      %p43 = por %p41, %p42
      %p44 = scmp.ne.s32.totalorder %s33, %s34
      %p45 = scmp.eq.s32.totalorder %s25, 0
      %p46 = por %p44, %p45
      %p47 = scmp.ne.s32.totalorder %s33, %s34
      %p48 = scmp.eq.s32.totalorder %s26, 1
      %p49 = por %p47, %p48
      %p51 = scmp.ne.s32.totalorder %s34, %s50
      %p52 = scmp.eq.s32.totalorder %s26, 0
      %p53 = por %p51, %p52
      %s55 = sadd.s32 %s54, 1
      %p58 = scmp.eq.s32.totalorder %s20, 1
      %p59 = scmp.ne.s32.totalorder %s54, %s56
      %p60 = scmp.eq.s32.totalorder %s20, 0
      %p61 = por %p59, %p60
      %p62 = scmp.ne.s32.totalorder %s54, %s56
      %p63 = scmp.eq.s32.totalorder %s25, 1
      %p64 = por %p62, %p63
      %p65 = scmp.ne.s32.totalorder %s56, %s57
      %p66 = scmp.eq.s32.totalorder %s25, 0
      %p67 = por %p65, %p66
      %p68 = scmp.ne.s32.totalorder %s56, %s57
      %p69 = scmp.eq.s32.totalorder %s26, 1
      %p70 = por %p68, %p69
      %p72 = scmp.ne.s32.totalorder %s57, %s71
      %p73 = scmp.eq.s32.totalorder %s26, 0
      %p74 = por %p72, %p73
      %s76 = sadd.s32 %s75, 1
      %p79 = scmp.eq.s32.totalorder %s20, 1
      %p80 = scmp.ne.s32.totalorder %s75, %s77
      %p81 = scmp.eq.s32.totalorder %s20, 0
      %p82 = por %p80, %p81
      %p83 = scmp.ne.s32.totalorder %s75, %s77
      %p84 = scmp.eq.s32.totalorder %s25, 1
      %p85 = por %p83, %p84
      %p86 = scmp.ne.s32.totalorder %s77, %s78
      %p87 = scmp.eq.s32.totalorder %s25, 0
      %p88 = por %p86, %p87
      %p89 = scmp.ne.s32.totalorder %s77, %s78
      %p90 = scmp.eq.s32.totalorder %s26, 1
      %p91 = por %p89, %p90
      %p93 = scmp.ne.s32.totalorder %s78, %s92
      %p94 = scmp.eq.s32.totalorder %s26, 0
      %p95 = por %p93, %p94
      %s97 = sadd.s32 %s96, 1
      %p100 = scmp.eq.s32.totalorder %s20, 1
      %p101 = scmp.ne.s32.totalorder %s96, %s98
      %p102 = scmp.eq.s32.totalorder %s20, 0
      %p103 = por %p101, %p102
      %p104 = scmp.ne.s32.totalorder %s96, %s98
      %p105 = scmp.eq.s32.totalorder %s25, 1
      %p106 = por %p104, %p105
      %p107 = scmp.ne.s32.totalorder %s98, %s99
      %p108 = scmp.eq.s32.totalorder %s25, 0
      %p109 = por %p107, %p108
      %p110 = scmp.ne.s32.totalorder %s98, %s99
      %p111 = scmp.eq.s32.totalorder %s26, 1
      %p112 = por %p110, %p111
      %p114 = scmp.ne.s32.totalorder %s99, %s113
      %p115 = scmp.eq.s32.totalorder %s26, 0
      %p116 = por %p114, %p115
      %s118 = sadd.s32 %s117, 1
      %p121 = scmp.eq.s32.totalorder %s20, 1
      %p122 = scmp.ne.s32.totalorder %s117, %s119
      %p123 = scmp.eq.s32.totalorder %s20, 0
      %p124 = por %p122, %p123
      %p125 = scmp.ne.s32.totalorder %s117, %s119
      %p126 = scmp.eq.s32.totalorder %s25, 1
      %p127 = por %p125, %p126
      %p128 = scmp.ne.s32.totalorder %s119, %s120
      %p129 = scmp.eq.s32.totalorder %s25, 0
      %p130 = por %p128, %p129
      %p131 = scmp.ne.s32.totalorder %s119, %s120
      %p132 = scmp.eq.s32.totalorder %s26, 1
      %p133 = por %p131, %p132
      %p135 = scmp.ne.s32.totalorder %s120, %s134
      %p136 = scmp.eq.s32.totalorder %s26, 0
      %p137 = por %p135, %p136
      %s139 = sadd.s32 %s138, 1
      %p142 = scmp.eq.s32.totalorder %s20, 1
      %p143 = scmp.ne.s32.totalorder %s138, %s140
      %p144 = scmp.eq.s32.totalorder %s20, 0
      %p145 = por %p143, %p144
      %p146 = scmp.ne.s32.totalorder %s138, %s140
      %p147 = scmp.eq.s32.totalorder %s25, 1
      %p148 = por %p146, %p147
      %p149 = scmp.ne.s32.totalorder %s140, %s141
      %p150 = scmp.eq.s32.totalorder %s25, 0
      %p151 = por %p149, %p150
      %p152 = scmp.ne.s32.totalorder %s140, %s141
      %p153 = scmp.eq.s32.totalorder %s26, 1
      %p154 = por %p152, %p153
      %p156 = scmp.ne.s32.totalorder %s141, %s155
      %p157 = scmp.eq.s32.totalorder %s26, 0
      %p158 = por %p156, %p157
      %s160 = sadd.s32 %s159, 1
      %p163 = scmp.eq.s32.totalorder %s20, 1
      %p164 = scmp.ne.s32.totalorder %s159, %s161
      %p165 = scmp.eq.s32.totalorder %s20, 0
      %p166 = por %p164, %p165
      %p167 = scmp.ne.s32.totalorder %s159, %s161
      %p168 = scmp.eq.s32.totalorder %s25, 1
      %p169 = por %p167, %p168
      %p170 = scmp.ne.s32.totalorder %s161, %s162
      %p171 = scmp.eq.s32.totalorder %s25, 0
      %p172 = por %p170, %p171
      %p173 = scmp.ne.s32.totalorder %s161, %s162
      %p174 = scmp.eq.s32.totalorder %s26, 1
      %p175 = por %p173, %p174
      %p177 = scmp.ne.s32.totalorder %s162, %s176
      %p178 = scmp.eq.s32.totalorder %s26, 0
      %p179 = por %p177, %p178
      %s181 = sadd.s32 %s180, 1
      %p184 = scmp.eq.s32.totalorder %s20, 1
      %p185 = scmp.ne.s32.totalorder %s180, %s182
      %p186 = scmp.eq.s32.totalorder %s20, 0
      %p187 = por %p185, %p186
      %p188 = scmp.ne.s32.totalorder %s180, %s182
      %p189 = scmp.eq.s32.totalorder %s25, 1
      %p190 = por %p188, %p189
      %p191 = scmp.ne.s32.totalorder %s182, %s183
      %p192 = scmp.eq.s32.totalorder %s25, 0
      %p193 = por %p191, %p192
      %p194 = scmp.ne.s32.totalorder %s182, %s183
      %p195 = scmp.eq.s32.totalorder %s26, 1
      %p196 = por %p194, %p195
      %p198 = scmp.ne.s32.totalorder %s183, %s197
      %p199 = scmp.eq.s32.totalorder %s26, 0
      %p200 = por %p198, %p199
      %s202 = sadd.s32 %s201, 1
      %p205 = scmp.eq.s32.totalorder %s20, 1
      %p206 = scmp.ne.s32.totalorder %s201, %s203
      %p207 = scmp.eq.s32.totalorder %s20, 0
      %p208 = por %p206, %p207
      %p209 = scmp.ne.s32.totalorder %s201, %s203
      %p210 = scmp.eq.s32.totalorder %s25, 1
      %p211 = por %p209, %p210
      %p212 = scmp.ne.s32.totalorder %s203, %s204
      %p213 = scmp.eq.s32.totalorder %s25, 0
      %p214 = por %p212, %p213
      %p215 = scmp.ne.s32.totalorder %s203, %s204
      %p216 = scmp.eq.s32.totalorder %s26, 1
      %p217 = por %p215, %p216
      %p219 = scmp.ne.s32.totalorder %s204, %s218
      %p220 = scmp.eq.s32.totalorder %s26, 0
      %p221 = por %p219, %p220
      %s222 = ssub.s32 %s20, %s27
      %p223 = scmp.eq.s32.totalorder %s222, 0
      %s225 = sadd.s32 %s224, 1
      %s226 = scalar_select %p223, %s224, %s225
      %p229 = pneg %p223
      %p230 = scmp.eq.s32.totalorder %s20, 1
      %p231 = por %p229, %p230
      %p232 = scmp.ne.s32.totalorder %s224, %s227
      %p233 = scmp.eq.s32.totalorder %s20, 0
      %p234 = por %p232, %p233
      %p235 = scmp.ne.s32.totalorder %s224, %s227
      %p236 = scmp.eq.s32.totalorder %s25, 1
      %p237 = por %p235, %p236
      %p238 = scmp.ne.s32.totalorder %s227, %s228
      %p239 = scmp.eq.s32.totalorder %s25, 0
      %p240 = por %p238, %p239
      %p241 = scmp.ne.s32.totalorder %s227, %s228
      %p242 = scmp.eq.s32.totalorder %s26, 1
      %p243 = por %p241, %p242
      %p245 = scmp.ne.s32.totalorder %s228, %s244
      %p246 = scmp.eq.s32.totalorder %s26, 0
      %p247 = por %p245, %p246
      %p248 = scmp.le.s32.totalorder 1, %s20
      %p249 = scmp.lt.s32.totalorder %s20, 3
      %p250 = pnand %p248, %p249
      %p251 = pneg %p250
      // Predicated region
      $region9: #{tpu_custom_call.1} parent=5 // pred_check
        _
      $region10: #{tpu_custom_call.1} parent=5 // pred_check_branch
        %253 = sbr.rel (%p250) target = $region12
      $region11: #{tpu_custom_call.1} parent=5 // pred_region
        %s254 = ssub.s32 %s20, 1
        // Predicated region
        $region13: #{tpu_custom_call.1} parent=11 // pred_check
          %p255 = pneg %p67
        $region14: #{tpu_custom_call.1} parent=11 // pred_check_branch
          %257 = sbr.rel (%p255) target = $region16
        $region15: #{tpu_custom_call.1} parent=11 // pred_region
          _
        $region16: #{tpu_custom_call.1} parent=11 // pred_fallthru
          _
        // Predicated region
        $region17: #{tpu_custom_call.1} parent=11 // pred_check
          %p258 = pneg %p88
        $region18: #{tpu_custom_call.1} parent=11 // pred_check_branch
          %260 = sbr.rel (%p258) target = $region20
        $region19: #{tpu_custom_call.1} parent=11 // pred_region
          _
        $region20: #{tpu_custom_call.1} parent=11 // pred_fallthru
          _
        // Predicated region
        $region21: #{tpu_custom_call.1} parent=11 // pred_check
          %p261 = pneg %p109
        $region22: #{tpu_custom_call.1} parent=11 // pred_check_branch
          %263 = sbr.rel (%p261) target = $region24
        $region23: #{tpu_custom_call.1} parent=11 // pred_region
          _
        $region24: #{tpu_custom_call.1} parent=11 // pred_fallthru
          _
        // Predicated region
        $region25: #{tpu_custom_call.1} parent=11 // pred_check
          %p264 = pneg %p130
        $region26: #{tpu_custom_call.1} parent=11 // pred_check_branch
          %266 = sbr.rel (%p264) target = $region28
        $region27: #{tpu_custom_call.1} parent=11 // pred_region
          _
        $region28: #{tpu_custom_call.1} parent=11 // pred_fallthru
          _
        // Predicated region
        $region29: #{tpu_custom_call.1} parent=11 // pred_check
          %p267 = pneg %p151
        $region30: #{tpu_custom_call.1} parent=11 // pred_check_branch
          %269 = sbr.rel (%p267) target = $region32
        $region31: #{tpu_custom_call.1} parent=11 // pred_region
          _
        $region32: #{tpu_custom_call.1} parent=11 // pred_fallthru
          _
        // Predicated region
        $region33: #{tpu_custom_call.1} parent=11 // pred_check
          %p270 = pneg %p172
        $region34: #{tpu_custom_call.1} parent=11 // pred_check_branch
          %272 = sbr.rel (%p270) target = $region36
        $region35: #{tpu_custom_call.1} parent=11 // pred_region
          _
        $region36: #{tpu_custom_call.1} parent=11 // pred_fallthru
          _
        // Predicated region
        $region37: #{tpu_custom_call.1} parent=11 // pred_check
          %p273 = pneg %p193
        $region38: #{tpu_custom_call.1} parent=11 // pred_check_branch
          %275 = sbr.rel (%p273) target = $region40
        $region39: #{tpu_custom_call.1} parent=11 // pred_region
          _
        $region40: #{tpu_custom_call.1} parent=11 // pred_fallthru
          _
        // Predicated region
        $region41: #{tpu_custom_call.1} parent=11 // pred_check
          %p276 = pneg %p214
        $region42: #{tpu_custom_call.1} parent=11 // pred_check_branch
          %278 = sbr.rel (%p276) target = $region44
        $region43: #{tpu_custom_call.1} parent=11 // pred_region
          _
        $region44: #{tpu_custom_call.1} parent=11 // pred_fallthru
          _
      $region12: #{tpu_custom_call.1} parent=5 // pred_fallthru
        _
      %p279 = scmp.lt.s32.totalorder %s20, 2
      // Predicated region
      $region45: #{tpu_custom_call.1} parent=5 // pred_check
        %p280 = pneg %p279
      $region46: #{tpu_custom_call.1} parent=5 // pred_check_branch
        %282 = sbr.rel (%p280) target = $region48
      $region47: #{tpu_custom_call.1} parent=5 // pred_region
        // Predicated region
        $region49: #{tpu_custom_call.1} parent=47 // pred_check
          %p283 = pneg %p40
        $region50: #{tpu_custom_call.1} parent=47 // pred_check_branch
          %285 = sbr.rel (%p283) target = $region52
        $region51: #{tpu_custom_call.1} parent=47 // pred_region
          %s286 = smul.u32 4, %s20
          %p287 = scmp.lt.s32.totalorder %s286, 7
          %s288 = scalar_select %p287, %s286, 7
          %s289 = smul.addr %s288, 2
          %s290 = scalar_lea.vmem %s0, %s289
          %s291 = smul.u32 4, %s20
        $region52: #{tpu_custom_call.1} parent=47 // pred_fallthru
          _
      $region48: #{tpu_custom_call.1} parent=5 // pred_fallthru
        _
      %p292 = scmp.le.s32.totalorder 1, %s20
      %p293 = scmp.lt.s32.totalorder %s20, 3
      %p294 = pnand %p292, %p293
      %p295 = pneg %p294
      // Predicated region
      $region53: #{tpu_custom_call.1} parent=5 // pred_check
        _
      $region54: #{tpu_custom_call.1} parent=5 // pred_check_branch
        %297 = sbr.rel (%p294) target = $region56
      $region55: #{tpu_custom_call.1} parent=5 // pred_region
        %s298 = ssub.s32 %s20, 1
        %s299 = smul.u32 4, %s25
        %p300 = scmp.lt.s32.totalorder %s299, 7
        %s301 = scalar_select %p300, %s299, 7
        %s302 = smul.addr %s301, 2
        %s303 = scalar_lea.vmem %s0, %s302
        %p304 = pneg %p46
        %p305 = pneg %p43
        %p306 = pneg %p67
        %p307 = pneg %p64
        %p308 = pneg %p88
        %p309 = pneg %p85
        %p310 = pneg %p109
        %p311 = pneg %p106
        %p312 = pneg %p130
        %p313 = pneg %p127
        %p314 = pneg %p151
        %p315 = pneg %p148
        %p316 = pneg %p172
        %p317 = pneg %p169
        %p318 = pneg %p193
        %p319 = pneg %p190
        %p320 = pneg %p214
        %p321 = pneg %p211
        %p322 = pneg %p240
        %p323 = pneg %p237
        %s324 = sand.u32 %s227, 1
        %s325 = scalar_lea.sflag [#allocation4], %s324
        %s326 = sand.u32 %s227, 1
        %s327 = smul.addr %s326, 4
        %s328 = scalar_lea.vmem [#allocation3], %s327
        %s329 = smul.u32 4, %s25
        %p330 = scmp.lt.s32.totalorder %s329, 7
        %s331 = scalar_select %p330, %s329, 7
        %s332 = smul.addr %s331, 2
        %s333 = scalar_lea.vmem %s0, %s332
        %s334 = smul.u32 4, %s25
        %s335 = smul.u32 4, %s25
        %v336 = vld [vmem:[%s333] sm:$0xff]
        %v337 = vld [vmem:[%s1] sm:$0x3]
        %v338 = vld [vmem:[%s2] sm:$0x3]
        %v339 = vld [vmem:[%s3] sm:$0xff]
        %v340 = vld [vmem:[%s3 + $0x8] sm:$0xff]
        %v341 = vld [vmem:[%s3 + $0x10] sm:$0xff]
        %v342 = vld [vmem:[%s3 + $0x18] sm:$0xff]
        %v343 = vld [vmem:[%s4] sm:$0xff]
        %v344 = vld [vmem:[%s4 + $0x8] sm:$0xff]
        %v345 = vld [vmem:[%s4 + $0x10] sm:$0xff]
        %v346 = vld [vmem:[%s4 + $0x18] sm:$0xff]
        %v347 = vsub.f32 %v338, %v337
        %v348 = vrcp.pop %v347
        %v349 = vmul.f32 2.0, %v348
        %v350 = vmul.f32 %v337, %v349
        %v351 = vadd.f32 %v350, 1.0
        %v352 = vlaneseq
        %v353 = vshrl.u32 %v352, 7
        %v354 = vsub.s32 0, %v353
        %v355 = vrot.slane %v349, %v354
        %v356 = vmul.f32 %v339, %v355
        %v357 = vmul.f32 %v340, %v355
        %v358 = vmul.f32 %v341, %v355
        %v359 = vmul.f32 %v342, %v355
        %v360 = vlaneseq
        %v361 = vshrl.u32 %v360, 7
        %v362 = vsub.s32 1, %v361
        %v363 = vrot.slane %v349, %v362
        %365 = vrot.lane.b32.xlu0 %v363, 1
        %v366 = vpop.permute.xlu0 %365
        %v368 = vmul.f32 %v339, %v366
        %v369 = vmul.f32 %v340, %v366
        %v370 = vmul.f32 %v341, %v366
        %v371 = vmul.f32 %v342, %v366
        %v372 = vlaneseq
        %v373 = vshrl.u32 %v372, 7
        %v374 = vsub.s32 0, %v373
        %v375 = vrot.slane %v351, %v374
        %v376 = vmul.f32 %v339, %v375
        %v377 = vmul.f32 %v340, %v375
        %v378 = vmul.f32 %v341, %v375
        %v379 = vmul.f32 %v342, %v375
        %v380 = vlaneseq
        %v381 = vshrl.u32 %v380, 7
        %v382 = vsub.s32 1, %v381
        %v383 = vrot.slane %v351, %v382
        %385 = vrot.lane.b32.xlu0 %v383, 1
        %v386 = vpop.permute.xlu0 %385
        %v388 = vmul.f32 %v339, %v386
        %v389 = vmul.f32 %v340, %v386
        %v390 = vmul.f32 %v341, %v386
        %v391 = vmul.f32 %v342, %v386
        %396 = vrot.lane.b32.xlu0 %v388, 127
        %v397 = vpop.permute.xlu0 %396
        %398 = vrot.lane.b32.xlu0 %v389, 127
        %v399 = vpop.permute.xlu0 %398
        %400 = vrot.lane.b32.xlu0 %v390, 127
        %v401 = vpop.permute.xlu0 %400
        %402 = vrot.lane.b32.xlu0 %v391, 127
        %v403 = vpop.permute.xlu0 %402
        %v408 = vadd.f32 %v376, %v397
        %v409 = vadd.f32 %v377, %v399
        %v410 = vadd.f32 %v378, %v401
        %v411 = vadd.f32 %v379, %v403
        %v412 = vsub.f32 %v343, %v408
        %v413 = vsub.f32 %v344, %v409
        %v414 = vsub.f32 %v345, %v410
        %v415 = vsub.f32 %v346, %v411
        %417 = vset.pattern.permute.xlu0 0
        %418 = vperm.xlu0 %417, %v356
        %v419 = vpop.permute.xlu0 %418
        %422 = vset.pattern.permute.xlu0 0
        %423 = vperm.xlu0 %422, %v357
        %v424 = vpop.permute.xlu0 %423
        %427 = vset.pattern.permute.xlu0 0
        %428 = vperm.xlu0 %427, %v358
        %v429 = vpop.permute.xlu0 %428
        %432 = vset.pattern.permute.xlu0 0
        %433 = vperm.xlu0 %432, %v359
        %v434 = vpop.permute.xlu0 %433
        %v437 = vlaneseq
        %v438 = vshrl.u32 %v437, 7
        %v439 = vsub.s32 0, %v438
        %v440 = vrot.slane %v336, %v439
        %v441 = vlaneseq
        %v442 = vshrl.u32 %v441, 7
        %v443 = vsub.s32 2, %v442
        %v444 = vrot.slane %v336, %v443
        %v445 = vlaneseq
        %v446 = vshrl.u32 %v445, 7
        %v447 = vsub.s32 4, %v446
        %v448 = vrot.slane %v336, %v447
        %v449 = vlaneseq
        %v450 = vshrl.u32 %v449, 7
        %v451 = vsub.s32 6, %v450
        %v452 = vrot.slane %v336, %v451
        %v457 = vlaneseq
        %v458 = vshrl.u32 %v457, 7
        %v459 = vsub.s32 0, %v458
        %v460 = vrot.slane %v440, %v459
        %v461 = vlaneseq
        %v462 = vshrl.u32 %v461, 7
        %v463 = vsub.s32 0, %v462
        %v464 = vrot.slane %v444, %v463
        %v465 = vlaneseq
        %v466 = vshrl.u32 %v465, 7
        %v467 = vsub.s32 0, %v466
        %v468 = vrot.slane %v448, %v467
        %v469 = vlaneseq
        %v470 = vshrl.u32 %v469, 7
        %v471 = vsub.s32 0, %v470
        %v472 = vrot.slane %v452, %v471
        %v473 = vmul.f32 %v419, %v460
        %v474 = vmul.f32 %v419, %v464
        %v475 = vmul.f32 %v419, %v468
        %v476 = vmul.f32 %v419, %v472
        %v477 = vmul.f32 %v424, %v460
        %v478 = vmul.f32 %v424, %v464
        %v479 = vmul.f32 %v424, %v468
        %v480 = vmul.f32 %v424, %v472
        %v481 = vmul.f32 %v429, %v460
        %v482 = vmul.f32 %v429, %v464
        %v483 = vmul.f32 %v429, %v468
        %v484 = vmul.f32 %v429, %v472
        %v485 = vmul.f32 %v434, %v460
        %v486 = vmul.f32 %v434, %v464
        %v487 = vmul.f32 %v434, %v468
        %v488 = vmul.f32 %v434, %v472
        %490 = vset.pattern.permute.xlu0 1
        %491 = vperm.xlu0 %490, %v368
        %v492 = vpop.permute.xlu0 %491
        %495 = vset.pattern.permute.xlu0 1
        %496 = vperm.xlu0 %495, %v369
        %v497 = vpop.permute.xlu0 %496
        %500 = vset.pattern.permute.xlu0 1
        %501 = vperm.xlu0 %500, %v370
        %v502 = vpop.permute.xlu0 %501
        %505 = vset.pattern.permute.xlu0 1
        %506 = vperm.xlu0 %505, %v371
        %v507 = vpop.permute.xlu0 %506
        %v509 = vlaneseq
        %v510 = vshrl.u32 %v509, 7
        %v511 = vsub.s32 1, %v510
        %v512 = vrot.slane %v336, %v511
        %v513 = vlaneseq
        %v514 = vshrl.u32 %v513, 7
        %v515 = vsub.s32 3, %v514
        %v516 = vrot.slane %v336, %v515
        %v517 = vlaneseq
        %v518 = vshrl.u32 %v517, 7
        %v519 = vsub.s32 5, %v518
        %v520 = vrot.slane %v336, %v519
        %v521 = vlaneseq
        %v522 = vshrl.u32 %v521, 7
        %v523 = vsub.s32 7, %v522
        %v524 = vrot.slane %v336, %v523
        %v529 = vlaneseq
        %v530 = vshrl.u32 %v529, 7
        %v531 = vsub.s32 1, %v530
        %v532 = vrot.slane %v512, %v531
        %v533 = vlaneseq
        %v534 = vshrl.u32 %v533, 7
        %v535 = vsub.s32 1, %v534
        %v536 = vrot.slane %v516, %v535
        %v537 = vlaneseq
        %v538 = vshrl.u32 %v537, 7
        %v539 = vsub.s32 1, %v538
        %v540 = vrot.slane %v520, %v539
        %v541 = vlaneseq
        %v542 = vshrl.u32 %v541, 7
        %v543 = vsub.s32 1, %v542
        %v544 = vrot.slane %v524, %v543
        %v545 = vmul.f32 %v492, %v532
        %v546 = vmul.f32 %v492, %v536
        %v547 = vmul.f32 %v492, %v540
        %v548 = vmul.f32 %v492, %v544
        %v549 = vmul.f32 %v497, %v532
        %v550 = vmul.f32 %v497, %v536
        %v551 = vmul.f32 %v497, %v540
        %v552 = vmul.f32 %v497, %v544
        %v553 = vmul.f32 %v502, %v532
        %v554 = vmul.f32 %v502, %v536
        %v555 = vmul.f32 %v502, %v540
        %v556 = vmul.f32 %v502, %v544
        %v557 = vmul.f32 %v507, %v532
        %v558 = vmul.f32 %v507, %v536
        %v559 = vmul.f32 %v507, %v540
        %v560 = vmul.f32 %v507, %v544
        %v561 = vadd.f32 %v473, %v545
        %v562 = vadd.f32 %v474, %v546
        %v563 = vadd.f32 %v475, %v547
        %v564 = vadd.f32 %v476, %v548
        %v565 = vadd.f32 %v477, %v549
        %v566 = vadd.f32 %v478, %v550
        %v567 = vadd.f32 %v479, %v551
        %v568 = vadd.f32 %v480, %v552
        %v569 = vadd.f32 %v481, %v553
        %v570 = vadd.f32 %v482, %v554
        %v571 = vadd.f32 %v483, %v555
        %v572 = vadd.f32 %v484, %v556
        %v573 = vadd.f32 %v485, %v557
        %v574 = vadd.f32 %v486, %v558
        %v575 = vadd.f32 %v487, %v559
        %v576 = vadd.f32 %v488, %v560
        %578 = vset.pattern.permute.xlu0 0
        %579 = vperm.xlu0 %578, %v412
        %v580 = vpop.permute.xlu0 %579
        %583 = vset.pattern.permute.xlu0 0
        %584 = vperm.xlu0 %583, %v413
        %v585 = vpop.permute.xlu0 %584
        %588 = vset.pattern.permute.xlu0 0
        %589 = vperm.xlu0 %588, %v414
        %v590 = vpop.permute.xlu0 %589
        %593 = vset.pattern.permute.xlu0 0
        %594 = vperm.xlu0 %593, %v415
        %v595 = vpop.permute.xlu0 %594
        %v597 = vadd.f32 %v561, %v580
        %v598 = vadd.f32 %v562, %v580
        %v599 = vadd.f32 %v563, %v580
        %v600 = vadd.f32 %v564, %v580
        %v601 = vadd.f32 %v565, %v585
        %v602 = vadd.f32 %v566, %v585
        %v603 = vadd.f32 %v567, %v585
        %v604 = vadd.f32 %v568, %v585
        %v605 = vadd.f32 %v569, %v590
        %v606 = vadd.f32 %v570, %v590
        %v607 = vadd.f32 %v571, %v590
        %v608 = vadd.f32 %v572, %v590
        %v609 = vadd.f32 %v573, %v595
        %v610 = vadd.f32 %v574, %v595
        %v611 = vadd.f32 %v575, %v595
        %v612 = vadd.f32 %v576, %v595
        %v613 = vmax.f32 %v597, 0.0
        %v614 = vmax.f32 %v598, 0.0
        %v615 = vmax.f32 %v599, 0.0
        %v616 = vmax.f32 %v600, 0.0
        %v617 = vmax.f32 %v601, 0.0
        %v618 = vmax.f32 %v602, 0.0
        %v619 = vmax.f32 %v603, 0.0
        %v620 = vmax.f32 %v604, 0.0
        %v621 = vmax.f32 %v605, 0.0
        %v622 = vmax.f32 %v606, 0.0
        %v623 = vmax.f32 %v607, 0.0
        %v624 = vmax.f32 %v608, 0.0
        %v625 = vmax.f32 %v609, 0.0
        %v626 = vmax.f32 %v610, 0.0
        %v627 = vmax.f32 %v611, 0.0
        %v628 = vmax.f32 %v612, 0.0
        %v629 = vand.u32 2147483647, %v597
        %v630 = vand.u32 2147483647, %v598
        %v631 = vand.u32 2147483647, %v599
        %v632 = vand.u32 2147483647, %v600
        %v633 = vand.u32 2147483647, %v601
        %v634 = vand.u32 2147483647, %v602
        %v635 = vand.u32 2147483647, %v603
        %v636 = vand.u32 2147483647, %v604
        %v637 = vand.u32 2147483647, %v605
        %v638 = vand.u32 2147483647, %v606
        %v639 = vand.u32 2147483647, %v607
        %v640 = vand.u32 2147483647, %v608
        %v641 = vand.u32 2147483647, %v609
        %v642 = vand.u32 2147483647, %v610
        %v643 = vand.u32 2147483647, %v611
        %v644 = vand.u32 2147483647, %v612
        %v645 = vsub.f32 0.0, %v629
        %v646 = vsub.f32 0.0, %v630
        %v647 = vsub.f32 0.0, %v631
        %v648 = vsub.f32 0.0, %v632
        %v649 = vsub.f32 0.0, %v633
        %v650 = vsub.f32 0.0, %v634
        %v651 = vsub.f32 0.0, %v635
        %v652 = vsub.f32 0.0, %v636
        %v653 = vsub.f32 0.0, %v637
        %v654 = vsub.f32 0.0, %v638
        %v655 = vsub.f32 0.0, %v639
        %v656 = vsub.f32 0.0, %v640
        %v657 = vsub.f32 0.0, %v641
        %v658 = vsub.f32 0.0, %v642
        %v659 = vsub.f32 0.0, %v643
        %v660 = vsub.f32 0.0, %v644
        %v661 = vmul.f32 %v645, 1.442695
        %v662 = vpow.pop %v661
        %v663 = vmul.f32 %v646, 1.442695
        %v664 = vpow.pop %v663
        %v665 = vmul.f32 %v647, 1.442695
        %v666 = vpow.pop %v665
        %v667 = vmul.f32 %v648, 1.442695
        %v668 = vpow.pop %v667
        %v669 = vmul.f32 %v649, 1.442695
        %v670 = vpow.pop %v669
        %v671 = vmul.f32 %v650, 1.442695
        %v672 = vpow.pop %v671
        %v673 = vmul.f32 %v651, 1.442695
        %v674 = vpow.pop %v673
        %v675 = vmul.f32 %v652, 1.442695
        %v676 = vpow.pop %v675
        %v677 = vmul.f32 %v653, 1.442695
        %v678 = vpow.pop %v677
        %v679 = vmul.f32 %v654, 1.442695
        %v680 = vpow.pop %v679
        %v681 = vmul.f32 %v655, 1.442695
        %v682 = vpow.pop %v681
        %v683 = vmul.f32 %v656, 1.442695
        %v684 = vpow.pop %v683
        %v685 = vmul.f32 %v657, 1.442695
        %v686 = vpow.pop %v685
        %v687 = vmul.f32 %v658, 1.442695
        %v688 = vpow.pop %v687
        %v689 = vmul.f32 %v659, 1.442695
        %v690 = vpow.pop %v689
        %v691 = vmul.f32 %v660, 1.442695
        %v692 = vpow.pop %v691
        %v693 = vadd.f32 %v662, 1.0
        %v694 = vlog2.pop %v693
        %v695 = vmul.f32 %v694, 0.6931472
        %v696 = vmul.f32 -0.5, %v662
        %v697 = vadd.f32 %v696, 1.0
        %v698 = vmul.f32 %v697, %v662
        %v699 = vand.u32 2147483647, %v662
        %vm700 = vcmp.lt.f32.partialorder %v699, 0.0004427343
        %v701 = vsel %vm700, %v698, %v695
        %v702 = vadd.f32 %v664, 1.0
        %v703 = vlog2.pop %v702
        %v704 = vmul.f32 %v703, 0.6931472
        %v705 = vmul.f32 -0.5, %v664
        %v706 = vadd.f32 %v705, 1.0
        %v707 = vmul.f32 %v706, %v664
        %v708 = vand.u32 2147483647, %v664
        %vm709 = vcmp.lt.f32.partialorder %v708, 0.0004427343
        %v710 = vsel %vm709, %v707, %v704
        %v711 = vadd.f32 %v666, 1.0
        %v712 = vlog2.pop %v711
        %v713 = vmul.f32 %v712, 0.6931472
        %v714 = vmul.f32 -0.5, %v666
        %v715 = vadd.f32 %v714, 1.0
        %v716 = vmul.f32 %v715, %v666
        %v717 = vand.u32 2147483647, %v666
        %vm718 = vcmp.lt.f32.partialorder %v717, 0.0004427343
        %v719 = vsel %vm718, %v716, %v713
        %v720 = vadd.f32 %v668, 1.0
        %v721 = vlog2.pop %v720
        %v722 = vmul.f32 %v721, 0.6931472
        %v723 = vmul.f32 -0.5, %v668
        %v724 = vadd.f32 %v723, 1.0
        %v725 = vmul.f32 %v724, %v668
        %v726 = vand.u32 2147483647, %v668
        %vm727 = vcmp.lt.f32.partialorder %v726, 0.0004427343
        %v728 = vsel %vm727, %v725, %v722
        %v729 = vadd.f32 %v670, 1.0
        %v730 = vlog2.pop %v729
        %v731 = vmul.f32 %v730, 0.6931472
        %v732 = vmul.f32 -0.5, %v670
        %v733 = vadd.f32 %v732, 1.0
        %v734 = vmul.f32 %v733, %v670
        %v735 = vand.u32 2147483647, %v670
        %vm736 = vcmp.lt.f32.partialorder %v735, 0.0004427343
        %v737 = vsel %vm736, %v734, %v731
        %v738 = vadd.f32 %v672, 1.0
        %v739 = vlog2.pop %v738
        %v740 = vmul.f32 %v739, 0.6931472
        %v741 = vmul.f32 -0.5, %v672
        %v742 = vadd.f32 %v741, 1.0
        %v743 = vmul.f32 %v742, %v672
        %v744 = vand.u32 2147483647, %v672
        %vm745 = vcmp.lt.f32.partialorder %v744, 0.0004427343
        %v746 = vsel %vm745, %v743, %v740
        %v747 = vadd.f32 %v674, 1.0
        %v748 = vlog2.pop %v747
        %v749 = vmul.f32 %v748, 0.6931472
        %v750 = vmul.f32 -0.5, %v674
        %v751 = vadd.f32 %v750, 1.0
        %v752 = vmul.f32 %v751, %v674
        %v753 = vand.u32 2147483647, %v674
        %vm754 = vcmp.lt.f32.partialorder %v753, 0.0004427343
        %v755 = vsel %vm754, %v752, %v749
        %v756 = vadd.f32 %v676, 1.0
        %v757 = vlog2.pop %v756
        %v758 = vmul.f32 %v757, 0.6931472
        %v759 = vmul.f32 -0.5, %v676
        %v760 = vadd.f32 %v759, 1.0
        %v761 = vmul.f32 %v760, %v676
        %v762 = vand.u32 2147483647, %v676
        %vm763 = vcmp.lt.f32.partialorder %v762, 0.0004427343
        %v764 = vsel %vm763, %v761, %v758
        %v765 = vadd.f32 %v678, 1.0
        %v766 = vlog2.pop %v765
        %v767 = vmul.f32 %v766, 0.6931472
        %v768 = vmul.f32 -0.5, %v678
        %v769 = vadd.f32 %v768, 1.0
        %v770 = vmul.f32 %v769, %v678
        %v771 = vand.u32 2147483647, %v678
        %vm772 = vcmp.lt.f32.partialorder %v771, 0.0004427343
        %v773 = vsel %vm772, %v770, %v767
        %v774 = vadd.f32 %v680, 1.0
        %v775 = vlog2.pop %v774
        %v776 = vmul.f32 %v775, 0.6931472
        %v777 = vmul.f32 -0.5, %v680
        %v778 = vadd.f32 %v777, 1.0
        %v779 = vmul.f32 %v778, %v680
        %v780 = vand.u32 2147483647, %v680
        %vm781 = vcmp.lt.f32.partialorder %v780, 0.0004427343
        %v782 = vsel %vm781, %v779, %v776
        %v783 = vadd.f32 %v682, 1.0
        %v784 = vlog2.pop %v783
        %v785 = vmul.f32 %v784, 0.6931472
        %v786 = vmul.f32 -0.5, %v682
        %v787 = vadd.f32 %v786, 1.0
        %v788 = vmul.f32 %v787, %v682
        %v789 = vand.u32 2147483647, %v682
        %vm790 = vcmp.lt.f32.partialorder %v789, 0.0004427343
        %v791 = vsel %vm790, %v788, %v785
        %v792 = vadd.f32 %v684, 1.0
        %v793 = vlog2.pop %v792
        %v794 = vmul.f32 %v793, 0.6931472
        %v795 = vmul.f32 -0.5, %v684
        %v796 = vadd.f32 %v795, 1.0
        %v797 = vmul.f32 %v796, %v684
        %v798 = vand.u32 2147483647, %v684
        %vm799 = vcmp.lt.f32.partialorder %v798, 0.0004427343
        %v800 = vsel %vm799, %v797, %v794
        %v801 = vadd.f32 %v686, 1.0
        %v802 = vlog2.pop %v801
        %v803 = vmul.f32 %v802, 0.6931472
        %v804 = vmul.f32 -0.5, %v686
        %v805 = vadd.f32 %v804, 1.0
        %v806 = vmul.f32 %v805, %v686
        %v807 = vand.u32 2147483647, %v686
        %vm808 = vcmp.lt.f32.partialorder %v807, 0.0004427343
        %v809 = vsel %vm808, %v806, %v803
        %v810 = vadd.f32 %v688, 1.0
        %v811 = vlog2.pop %v810
        %v812 = vmul.f32 %v811, 0.6931472
        %v813 = vmul.f32 -0.5, %v688
        %v814 = vadd.f32 %v813, 1.0
        %v815 = vmul.f32 %v814, %v688
        %v816 = vand.u32 2147483647, %v688
        %vm817 = vcmp.lt.f32.partialorder %v816, 0.0004427343
        %v818 = vsel %vm817, %v815, %v812
        %v819 = vadd.f32 %v690, 1.0
        %v820 = vlog2.pop %v819
        %v821 = vmul.f32 %v820, 0.6931472
        %v822 = vmul.f32 -0.5, %v690
        %v823 = vadd.f32 %v822, 1.0
        %v824 = vmul.f32 %v823, %v690
        %v825 = vand.u32 2147483647, %v690
        %vm826 = vcmp.lt.f32.partialorder %v825, 0.0004427343
        %v827 = vsel %vm826, %v824, %v821
        %v828 = vadd.f32 %v692, 1.0
        %v829 = vlog2.pop %v828
        %v830 = vmul.f32 %v829, 0.6931472
        %v831 = vmul.f32 -0.5, %v692
        %v832 = vadd.f32 %v831, 1.0
        %v833 = vmul.f32 %v832, %v692
        %v834 = vand.u32 2147483647, %v692
        %vm835 = vcmp.lt.f32.partialorder %v834, 0.0004427343
        %v836 = vsel %vm835, %v833, %v830
        %v837 = vadd.f32 %v613, %v701
        %v838 = vadd.f32 %v614, %v710
        %v839 = vadd.f32 %v615, %v719
        %v840 = vadd.f32 %v616, %v728
        %v841 = vadd.f32 %v617, %v737
        %v842 = vadd.f32 %v618, %v746
        %v843 = vadd.f32 %v619, %v755
        %v844 = vadd.f32 %v620, %v764
        %v845 = vadd.f32 %v621, %v773
        %v846 = vadd.f32 %v622, %v782
        %v847 = vadd.f32 %v623, %v791
        %v848 = vadd.f32 %v624, %v800
        %v849 = vadd.f32 %v625, %v809
        %v850 = vadd.f32 %v626, %v818
        %v851 = vadd.f32 %v627, %v827
        %v852 = vadd.f32 %v628, %v836
        %v853 = vld [vmem:[%s5] sm:$0xff]
        %v854 = vld [vmem:[%s5 + $0x8] sm:$0xff]
        %v855 = vld [vmem:[%s5 + $0x10] sm:$0xff]
        %v856 = vld [vmem:[%s5 + $0x18] sm:$0xff]
        %v857 = vld [vmem:[%s6] sm:$0xff]
        %v858 = vld [vmem:[%s6 + $0x8] sm:$0xff]
        %v859 = vld [vmem:[%s6 + $0x10] sm:$0xff]
        %v860 = vld [vmem:[%s6 + $0x18] sm:$0xff]
        %862 = vset.pattern.permute.xlu0 0
        %863 = vperm.xlu0 %862, %v857
        %v864 = vpop.permute.xlu0 %863
        %867 = vset.pattern.permute.xlu0 0
        %868 = vperm.xlu0 %867, %v858
        %v869 = vpop.permute.xlu0 %868
        %872 = vset.pattern.permute.xlu0 0
        %873 = vperm.xlu0 %872, %v859
        %v874 = vpop.permute.xlu0 %873
        %877 = vset.pattern.permute.xlu0 0
        %878 = vperm.xlu0 %877, %v860
        %v879 = vpop.permute.xlu0 %878
        %vm881 = vcmask 261120
        %v883 = vsel %vm881, %v853, 0
        %v886 = vsel %vm881, %v854, 0
        %v889 = vsel %vm881, %v855, 0
        %v892 = vsel %vm881, %v856, 0
        %894 = vmatprep.subr.mxu0 %v838
        %895 = vmatpush1.msra.mxu0 %v837
        %896 = vmatprep.subr.mxu0 %v842
        %897 = vmatpush1.msra.mxu0 %v841
        %898 = vmatprep.subr.mxu0 %v846
        %899 = vmatpush1.msra.mxu0 %v845
        %900 = vmatprep.subr.mxu0 %v850
        %901 = vmatpush1.msra.mxu0 %v849
        %902 = vmatprep.subr.mxu0 0.0
        %903 = vmatpush1.msra.mxu0 0.0
        %904 = vmatprep.subr.mxu0 0.0
        %905 = vmatpush1.msra.mxu0 0.0
        %906 = vmatprep.subr.mxu0 0.0
        %907 = vmatpush1.msra.mxu0 0.0
        %908 = vmatprep.subr.mxu0 0.0
        %909 = vmatpush1.msra.mxu0 0.0
        %910 = vmatprep.subr.mxu0 0.0
        %911 = vmatpush1.msra.mxu0 0.0
        %912 = vmatprep.subr.mxu0 0.0
        %913 = vmatpush1.msra.mxu0 0.0
        %914 = vmatprep.subr.mxu0 0.0
        %915 = vmatpush1.msra.mxu0 0.0
        %916 = vmatprep.subr.mxu0 0.0
        %917 = vmatpush1.msra.mxu0 0.0
        %918 = vmatprep.subr.mxu0 0.0
        %919 = vmatpush1.msra.mxu0 0.0
        %920 = vmatprep.subr.mxu0 0.0
        %921 = vmatpush1.msra.mxu0 0.0
        %922 = vmatprep.subr.mxu0 0.0
        %923 = vmatpush1.msra.mxu0 0.0
        %924 = vmatprep.subr.mxu0 0.0
        %925 = vmatpush1.msra.mxu0 0.0
        %926 = vmatprep.subr.mxu0 0.0
        %927 = vmatpush1.msra.mxu0 0.0
        %928 = vmatprep.subr.mxu0 0.0
        %929 = vmatpush1.msra.mxu0 0.0
        %930 = vmatprep.subr.mxu0 0.0
        %931 = vmatpush1.msra.mxu0 0.0
        %932 = vmatprep.subr.mxu0 0.0
        %933 = vmatpush1.msra.mxu0 0.0
        %934 = vmatprep.subr.mxu0 0.0
        %935 = vmatpush1.msra.mxu0 0.0
        %936 = vmatprep.subr.mxu0 0.0
        %937 = vmatpush1.msra.mxu0 0.0
        %938 = vmatprep.subr.mxu0 0.0
        %939 = vmatpush1.msra.mxu0 0.0
        %940 = vmatprep.subr.mxu0 0.0
        %941 = vmatpush1.msra.mxu0 0.0
        %942 = vmatprep.subr.mxu0 0.0
        %943 = vmatpush1.msra.mxu0 0.0
        %944 = vmatprep.subr.mxu0 0.0
        %945 = vmatpush1.msra.mxu0 0.0
        %946 = vmatprep.subr.mxu0 0.0
        %947 = vmatpush1.msra.mxu0 0.0
        %948 = vmatprep.subr.mxu0 0.0
        %949 = vmatpush1.msra.mxu0 0.0
        %950 = vmatprep.subr.mxu0 0.0
        %951 = vmatpush1.msra.mxu0 0.0
        %952 = vmatprep.subr.mxu0 0.0
        %953 = vmatpush1.msra.mxu0 0.0
        %954 = vmatprep.subr.mxu0 0.0
        %955 = vmatpush1.msra.mxu0 0.0
        %956 = vmatprep.subr.mxu0 0.0
        %957 = vmatpush1.msra.mxu0 0.0
        %958 = vmatprep.mubr.f32.mxu0 0.0
        %959 = vmatmul.mubr.f32.gmra.mrb[0].mxu0 %v883
        %v960 = vpop.f32.mrb[0].mxu0
        %v961 = vadd.f32 %v864, %v960
        %v962 = vpop.f32.mrb[0].mxu0
        %v963 = vadd.f32 %v864, %v962
        %964 = vmatprep.mubr.f32.mxu0 0.0
        %965 = vmatmul.mubr.f32.gmra.mrb[0].mxu0 %v886
        %v966 = vpop.f32.mrb[0].mxu0
        %v967 = vadd.f32 %v869, %v966
        %v968 = vpop.f32.mrb[0].mxu0
        %v969 = vadd.f32 %v869, %v968
        %970 = vmatprep.mubr.f32.mxu0 0.0
        %971 = vmatmul.mubr.f32.gmra.mrb[0].mxu0 %v889
        %v972 = vpop.f32.mrb[0].mxu0
        %v973 = vadd.f32 %v874, %v972
        %v974 = vpop.f32.mrb[0].mxu0
        %v975 = vadd.f32 %v874, %v974
        %976 = vmatprep.mubr.f32.mxu0 0.0
        %977 = vmatmul.mubr.f32.gmra.mrb[0].mxu0 %v892
        %v978 = vpop.f32.mrb[0].mxu0
        %v979 = vadd.f32 %v879, %v978
        %v980 = vpop.f32.mrb[0].mxu0
        %v981 = vadd.f32 %v879, %v980
        %982 = vdwg.mxu0
        %983 = vmatprep.subr.mxu0 %v840
        %984 = vmatpush1.msra.mxu0 %v839
        %985 = vmatprep.subr.mxu0 %v844
        %986 = vmatpush1.msra.mxu0 %v843
        %987 = vmatprep.subr.mxu0 %v848
        %988 = vmatpush1.msra.mxu0 %v847
        %989 = vmatprep.subr.mxu0 %v852
        %990 = vmatpush1.msra.mxu0 %v851
        %991 = vmatprep.subr.mxu0 0.0
        %992 = vmatpush1.msra.mxu0 0.0
        %993 = vmatprep.subr.mxu0 0.0
        %994 = vmatpush1.msra.mxu0 0.0
        %995 = vmatprep.subr.mxu0 0.0
        %996 = vmatpush1.msra.mxu0 0.0
        %997 = vmatprep.subr.mxu0 0.0
        %998 = vmatpush1.msra.mxu0 0.0
        %999 = vmatprep.subr.mxu0 0.0
        %1000 = vmatpush1.msra.mxu0 0.0
        %1001 = vmatprep.subr.mxu0 0.0
        %1002 = vmatpush1.msra.mxu0 0.0
        %1003 = vmatprep.subr.mxu0 0.0
        %1004 = vmatpush1.msra.mxu0 0.0
        %1005 = vmatprep.subr.mxu0 0.0
        %1006 = vmatpush1.msra.mxu0 0.0
        %1007 = vmatprep.subr.mxu0 0.0
        %1008 = vmatpush1.msra.mxu0 0.0
        %1009 = vmatprep.subr.mxu0 0.0
        %1010 = vmatpush1.msra.mxu0 0.0
        %1011 = vmatprep.subr.mxu0 0.0
        %1012 = vmatpush1.msra.mxu0 0.0
        %1013 = vmatprep.subr.mxu0 0.0
        %1014 = vmatpush1.msra.mxu0 0.0
        %1015 = vmatprep.subr.mxu0 0.0
        %1016 = vmatpush1.msra.mxu0 0.0
        %1017 = vmatprep.subr.mxu0 0.0
        %1018 = vmatpush1.msra.mxu0 0.0
        %1019 = vmatprep.subr.mxu0 0.0
        %1020 = vmatpush1.msra.mxu0 0.0
        %1021 = vmatprep.subr.mxu0 0.0
        %1022 = vmatpush1.msra.mxu0 0.0
        %1023 = vmatprep.subr.mxu0 0.0
        %1024 = vmatpush1.msra.mxu0 0.0
        %1025 = vmatprep.subr.mxu0 0.0
        %1026 = vmatpush1.msra.mxu0 0.0
        %1027 = vmatprep.subr.mxu0 0.0
        %1028 = vmatpush1.msra.mxu0 0.0
        %1029 = vmatprep.subr.mxu0 0.0
        %1030 = vmatpush1.msra.mxu0 0.0
        %1031 = vmatprep.subr.mxu0 0.0
        %1032 = vmatpush1.msra.mxu0 0.0
        %1033 = vmatprep.subr.mxu0 0.0
        %1034 = vmatpush1.msra.mxu0 0.0
        %1035 = vmatprep.subr.mxu0 0.0
        %1036 = vmatpush1.msra.mxu0 0.0
        %1037 = vmatprep.subr.mxu0 0.0
        %1038 = vmatpush1.msra.mxu0 0.0
        %1039 = vmatprep.subr.mxu0 0.0
        %1040 = vmatpush1.msra.mxu0 0.0
        %1041 = vmatprep.subr.mxu0 0.0
        %1042 = vmatpush1.msra.mxu0 0.0
        %1043 = vmatprep.subr.mxu0 0.0
        %1044 = vmatpush1.msra.mxu0 0.0
        %1045 = vmatprep.subr.mxu0 0.0
        %1046 = vmatpush1.msra.mxu0 0.0
        %1047 = vmatprep.mubr.f32.mxu0 0.0
        %1048 = vmatmul.mubr.f32.gmra.mrb[0].mxu0 %v883
        %v1049 = vpop.f32.mrb[0].mxu0
        %v1050 = vadd.f32 %v864, %v1049
        %v1051 = vpop.f32.mrb[0].mxu0
        %v1052 = vadd.f32 %v864, %v1051
        %1053 = vmatprep.mubr.f32.mxu0 0.0
        %1054 = vmatmul.mubr.f32.gmra.mrb[0].mxu0 %v886
        %v1055 = vpop.f32.mrb[0].mxu0
        %v1056 = vadd.f32 %v869, %v1055
        %v1057 = vpop.f32.mrb[0].mxu0
        %v1058 = vadd.f32 %v869, %v1057
        %1059 = vmatprep.mubr.f32.mxu0 0.0
        %1060 = vmatmul.mubr.f32.gmra.mrb[0].mxu0 %v889
        %v1061 = vpop.f32.mrb[0].mxu0
        %v1062 = vadd.f32 %v874, %v1061
        %v1063 = vpop.f32.mrb[0].mxu0
        %v1064 = vadd.f32 %v874, %v1063
        %1065 = vmatprep.mubr.f32.mxu0 0.0
        %1066 = vmatmul.mubr.f32.gmra.mrb[0].mxu0 %v892
        %v1067 = vpop.f32.mrb[0].mxu0
        %v1068 = vadd.f32 %v879, %v1067
        %v1069 = vpop.f32.mrb[0].mxu0
        %v1070 = vadd.f32 %v879, %v1069
        %1071 = vdwg.mxu0
        %v1072 = vmax.f32 %v961, 0.0
        %v1073 = vmax.f32 %v963, 0.0
        %v1074 = vmax.f32 %v1050, 0.0
        %v1075 = vmax.f32 %v1052, 0.0
        %v1076 = vmax.f32 %v967, 0.0
        %v1077 = vmax.f32 %v969, 0.0
        %v1078 = vmax.f32 %v1056, 0.0
        %v1079 = vmax.f32 %v1058, 0.0
        %v1080 = vmax.f32 %v973, 0.0
        %v1081 = vmax.f32 %v975, 0.0
        %v1082 = vmax.f32 %v1062, 0.0
        %v1083 = vmax.f32 %v1064, 0.0
        %v1084 = vmax.f32 %v979, 0.0
        %v1085 = vmax.f32 %v981, 0.0
        %v1086 = vmax.f32 %v1068, 0.0
        %v1087 = vmax.f32 %v1070, 0.0
        %v1088 = vand.u32 2147483647, %v961
        %v1089 = vand.u32 2147483647, %v963
        %v1090 = vand.u32 2147483647, %v1050
        %v1091 = vand.u32 2147483647, %v1052
        %v1092 = vand.u32 2147483647, %v967
        %v1093 = vand.u32 2147483647, %v969
        %v1094 = vand.u32 2147483647, %v1056
        %v1095 = vand.u32 2147483647, %v1058
        %v1096 = vand.u32 2147483647, %v973
        %v1097 = vand.u32 2147483647, %v975
        %v1098 = vand.u32 2147483647, %v1062
        %v1099 = vand.u32 2147483647, %v1064
        %v1100 = vand.u32 2147483647, %v979
        %v1101 = vand.u32 2147483647, %v981
        %v1102 = vand.u32 2147483647, %v1068
        %v1103 = vand.u32 2147483647, %v1070
        %v1104 = vsub.f32 0.0, %v1088
        %v1105 = vsub.f32 0.0, %v1089
        %v1106 = vsub.f32 0.0, %v1090
        %v1107 = vsub.f32 0.0, %v1091
        %v1108 = vsub.f32 0.0, %v1092
        %v1109 = vsub.f32 0.0, %v1093
        %v1110 = vsub.f32 0.0, %v1094
        %v1111 = vsub.f32 0.0, %v1095
        %v1112 = vsub.f32 0.0, %v1096
        %v1113 = vsub.f32 0.0, %v1097
        %v1114 = vsub.f32 0.0, %v1098
        %v1115 = vsub.f32 0.0, %v1099
        %v1116 = vsub.f32 0.0, %v1100
        %v1117 = vsub.f32 0.0, %v1101
        %v1118 = vsub.f32 0.0, %v1102
        %v1119 = vsub.f32 0.0, %v1103
        %v1120 = vmul.f32 %v1104, 1.442695
        %v1121 = vpow.pop %v1120
        %v1122 = vmul.f32 %v1105, 1.442695
        %v1123 = vpow.pop %v1122
        %v1124 = vmul.f32 %v1106, 1.442695
        %v1125 = vpow.pop %v1124
        %v1126 = vmul.f32 %v1107, 1.442695
        %v1127 = vpow.pop %v1126
        %v1128 = vmul.f32 %v1108, 1.442695
        %v1129 = vpow.pop %v1128
        %v1130 = vmul.f32 %v1109, 1.442695
        %v1131 = vpow.pop %v1130
        %v1132 = vmul.f32 %v1110, 1.442695
        %v1133 = vpow.pop %v1132
        %v1134 = vmul.f32 %v1111, 1.442695
        %v1135 = vpow.pop %v1134
        %v1136 = vmul.f32 %v1112, 1.442695
        %v1137 = vpow.pop %v1136
        %v1138 = vmul.f32 %v1113, 1.442695
        %v1139 = vpow.pop %v1138
        %v1140 = vmul.f32 %v1114, 1.442695
        %v1141 = vpow.pop %v1140
        %v1142 = vmul.f32 %v1115, 1.442695
        %v1143 = vpow.pop %v1142
        %v1144 = vmul.f32 %v1116, 1.442695
        %v1145 = vpow.pop %v1144
        %v1146 = vmul.f32 %v1117, 1.442695
        %v1147 = vpow.pop %v1146
        %v1148 = vmul.f32 %v1118, 1.442695
        %v1149 = vpow.pop %v1148
        %v1150 = vmul.f32 %v1119, 1.442695
        %v1151 = vpow.pop %v1150
        %v1152 = vadd.f32 %v1121, 1.0
        %v1153 = vlog2.pop %v1152
        %v1154 = vmul.f32 %v1153, 0.6931472
        %v1155 = vmul.f32 -0.5, %v1121
        %v1156 = vadd.f32 %v1155, 1.0
        %v1157 = vmul.f32 %v1156, %v1121
        %v1158 = vand.u32 2147483647, %v1121
        %vm1159 = vcmp.lt.f32.partialorder %v1158, 0.0004427343
        %v1160 = vsel %vm1159, %v1157, %v1154
        %v1161 = vadd.f32 %v1123, 1.0
        %v1162 = vlog2.pop %v1161
        %v1163 = vmul.f32 %v1162, 0.6931472
        %v1164 = vmul.f32 -0.5, %v1123
        %v1165 = vadd.f32 %v1164, 1.0
        %v1166 = vmul.f32 %v1165, %v1123
        %v1167 = vand.u32 2147483647, %v1123
        %vm1168 = vcmp.lt.f32.partialorder %v1167, 0.0004427343
        %v1169 = vsel %vm1168, %v1166, %v1163
        %v1170 = vadd.f32 %v1125, 1.0
        %v1171 = vlog2.pop %v1170
        %v1172 = vmul.f32 %v1171, 0.6931472
        %v1173 = vmul.f32 -0.5, %v1125
        %v1174 = vadd.f32 %v1173, 1.0
        %v1175 = vmul.f32 %v1174, %v1125
        %v1176 = vand.u32 2147483647, %v1125
        %vm1177 = vcmp.lt.f32.partialorder %v1176, 0.0004427343
        %v1178 = vsel %vm1177, %v1175, %v1172
        %v1179 = vadd.f32 %v1127, 1.0
        %v1180 = vlog2.pop %v1179
        %v1181 = vmul.f32 %v1180, 0.6931472
        %v1182 = vmul.f32 -0.5, %v1127
        %v1183 = vadd.f32 %v1182, 1.0
        %v1184 = vmul.f32 %v1183, %v1127
        %v1185 = vand.u32 2147483647, %v1127
        %vm1186 = vcmp.lt.f32.partialorder %v1185, 0.0004427343
        %v1187 = vsel %vm1186, %v1184, %v1181
        %v1188 = vadd.f32 %v1129, 1.0
        %v1189 = vlog2.pop %v1188
        %v1190 = vmul.f32 %v1189, 0.6931472
        %v1191 = vmul.f32 -0.5, %v1129
        %v1192 = vadd.f32 %v1191, 1.0
        %v1193 = vmul.f32 %v1192, %v1129
        %v1194 = vand.u32 2147483647, %v1129
        %vm1195 = vcmp.lt.f32.partialorder %v1194, 0.0004427343
        %v1196 = vsel %vm1195, %v1193, %v1190
        %v1197 = vadd.f32 %v1131, 1.0
        %v1198 = vlog2.pop %v1197
        %v1199 = vmul.f32 %v1198, 0.6931472
        %v1200 = vmul.f32 -0.5, %v1131
        %v1201 = vadd.f32 %v1200, 1.0
        %v1202 = vmul.f32 %v1201, %v1131
        %v1203 = vand.u32 2147483647, %v1131
        %vm1204 = vcmp.lt.f32.partialorder %v1203, 0.0004427343
        %v1205 = vsel %vm1204, %v1202, %v1199
        %v1206 = vadd.f32 %v1133, 1.0
        %v1207 = vlog2.pop %v1206
        %v1208 = vmul.f32 %v1207, 0.6931472
        %v1209 = vmul.f32 -0.5, %v1133
        %v1210 = vadd.f32 %v1209, 1.0
        %v1211 = vmul.f32 %v1210, %v1133
        %v1212 = vand.u32 2147483647, %v1133
        %vm1213 = vcmp.lt.f32.partialorder %v1212, 0.0004427343
        %v1214 = vsel %vm1213, %v1211, %v1208
        %v1215 = vadd.f32 %v1135, 1.0
        %v1216 = vlog2.pop %v1215
        %v1217 = vmul.f32 %v1216, 0.6931472
        %v1218 = vmul.f32 -0.5, %v1135
        %v1219 = vadd.f32 %v1218, 1.0
        %v1220 = vmul.f32 %v1219, %v1135
        %v1221 = vand.u32 2147483647, %v1135
        %vm1222 = vcmp.lt.f32.partialorder %v1221, 0.0004427343
        %v1223 = vsel %vm1222, %v1220, %v1217
        %v1224 = vadd.f32 %v1137, 1.0
        %v1225 = vlog2.pop %v1224
        %v1226 = vmul.f32 %v1225, 0.6931472
        %v1227 = vmul.f32 -0.5, %v1137
        %v1228 = vadd.f32 %v1227, 1.0
        %v1229 = vmul.f32 %v1228, %v1137
        %v1230 = vand.u32 2147483647, %v1137
        %vm1231 = vcmp.lt.f32.partialorder %v1230, 0.0004427343
        %v1232 = vsel %vm1231, %v1229, %v1226
        %v1233 = vadd.f32 %v1139, 1.0
        %v1234 = vlog2.pop %v1233
        %v1235 = vmul.f32 %v1234, 0.6931472
        %v1236 = vmul.f32 -0.5, %v1139
        %v1237 = vadd.f32 %v1236, 1.0
        %v1238 = vmul.f32 %v1237, %v1139
        %v1239 = vand.u32 2147483647, %v1139
        %vm1240 = vcmp.lt.f32.partialorder %v1239, 0.0004427343
        %v1241 = vsel %vm1240, %v1238, %v1235
        %v1242 = vadd.f32 %v1141, 1.0
        %v1243 = vlog2.pop %v1242
        %v1244 = vmul.f32 %v1243, 0.6931472
        %v1245 = vmul.f32 -0.5, %v1141
        %v1246 = vadd.f32 %v1245, 1.0
        %v1247 = vmul.f32 %v1246, %v1141
        %v1248 = vand.u32 2147483647, %v1141
        %vm1249 = vcmp.lt.f32.partialorder %v1248, 0.0004427343
        %v1250 = vsel %vm1249, %v1247, %v1244
        %v1251 = vadd.f32 %v1143, 1.0
        %v1252 = vlog2.pop %v1251
        %v1253 = vmul.f32 %v1252, 0.6931472
        %v1254 = vmul.f32 -0.5, %v1143
        %v1255 = vadd.f32 %v1254, 1.0
        %v1256 = vmul.f32 %v1255, %v1143
        %v1257 = vand.u32 2147483647, %v1143
        %vm1258 = vcmp.lt.f32.partialorder %v1257, 0.0004427343
        %v1259 = vsel %vm1258, %v1256, %v1253
        %v1260 = vadd.f32 %v1145, 1.0
        %v1261 = vlog2.pop %v1260
        %v1262 = vmul.f32 %v1261, 0.6931472
        %v1263 = vmul.f32 -0.5, %v1145
        %v1264 = vadd.f32 %v1263, 1.0
        %v1265 = vmul.f32 %v1264, %v1145
        %v1266 = vand.u32 2147483647, %v1145
        %vm1267 = vcmp.lt.f32.partialorder %v1266, 0.0004427343
        %v1268 = vsel %vm1267, %v1265, %v1262
        %v1269 = vadd.f32 %v1147, 1.0
        %v1270 = vlog2.pop %v1269
        %v1271 = vmul.f32 %v1270, 0.6931472
        %v1272 = vmul.f32 -0.5, %v1147
        %v1273 = vadd.f32 %v1272, 1.0
        %v1274 = vmul.f32 %v1273, %v1147
        %v1275 = vand.u32 2147483647, %v1147
        %vm1276 = vcmp.lt.f32.partialorder %v1275, 0.0004427343
        %v1277 = vsel %vm1276, %v1274, %v1271
        %v1278 = vadd.f32 %v1149, 1.0
        %v1279 = vlog2.pop %v1278
        %v1280 = vmul.f32 %v1279, 0.6931472
        %v1281 = vmul.f32 -0.5, %v1149
        %v1282 = vadd.f32 %v1281, 1.0
        %v1283 = vmul.f32 %v1282, %v1149
        %v1284 = vand.u32 2147483647, %v1149
        %vm1285 = vcmp.lt.f32.partialorder %v1284, 0.0004427343
        %v1286 = vsel %vm1285, %v1283, %v1280
        %v1287 = vadd.f32 %v1151, 1.0
        %v1288 = vlog2.pop %v1287
        %v1289 = vmul.f32 %v1288, 0.6931472
        %v1290 = vmul.f32 -0.5, %v1151
        %v1291 = vadd.f32 %v1290, 1.0
        %v1292 = vmul.f32 %v1291, %v1151
        %v1293 = vand.u32 2147483647, %v1151
        %vm1294 = vcmp.lt.f32.partialorder %v1293, 0.0004427343
        %v1295 = vsel %vm1294, %v1292, %v1289
        %v1296 = vadd.f32 %v1072, %v1160
        %v1297 = vadd.f32 %v1073, %v1169
        %v1298 = vadd.f32 %v1074, %v1178
        %v1299 = vadd.f32 %v1075, %v1187
        %v1300 = vadd.f32 %v1076, %v1196
        %v1301 = vadd.f32 %v1077, %v1205
        %v1302 = vadd.f32 %v1078, %v1214
        %v1303 = vadd.f32 %v1079, %v1223
        %v1304 = vadd.f32 %v1080, %v1232
        %v1305 = vadd.f32 %v1081, %v1241
        %v1306 = vadd.f32 %v1082, %v1250
        %v1307 = vadd.f32 %v1083, %v1259
        %v1308 = vadd.f32 %v1084, %v1268
        %v1309 = vadd.f32 %v1085, %v1277
        %v1310 = vadd.f32 %v1086, %v1286
        %v1311 = vadd.f32 %v1087, %v1295
        %s1312 = scalar_lea.vmem %s5, 32
        %v1313 = vld [vmem:[%s1312] sm:$0xff]
        %v1314 = vld [vmem:[%s1312 + $0x8] sm:$0xff]
        %v1315 = vld [vmem:[%s1312 + $0x10] sm:$0xff]
        %v1316 = vld [vmem:[%s1312 + $0x18] sm:$0xff]
        %s1317 = scalar_lea.vmem %s6, 32
        %v1318 = vld [vmem:[%s1317] sm:$0xff]
        %v1319 = vld [vmem:[%s1317 + $0x8] sm:$0xff]
        %v1320 = vld [vmem:[%s1317 + $0x10] sm:$0xff]
        %v1321 = vld [vmem:[%s1317 + $0x18] sm:$0xff]
        %1323 = vset.pattern.permute.xlu0 0
        %1324 = vperm.xlu0 %1323, %v1318
        %v1325 = vpop.permute.xlu0 %1324
        %1328 = vset.pattern.permute.xlu0 0
        %1329 = vperm.xlu0 %1328, %v1319
        %v1330 = vpop.permute.xlu0 %1329
        %1333 = vset.pattern.permute.xlu0 0
        %1334 = vperm.xlu0 %1333, %v1320
        %v1335 = vpop.permute.xlu0 %1334
        %1338 = vset.pattern.permute.xlu0 0
        %1339 = vperm.xlu0 %1338, %v1321
        %v1340 = vpop.permute.xlu0 %1339
        %v1343 = vsel %vm881, %v1313, 0
        %v1346 = vsel %vm881, %v1314, 0
        %v1349 = vsel %vm881, %v1315, 0
        %v1352 = vsel %vm881, %v1316, 0
        %1354 = vmatprep.subr.mxu0 %v1297
        %1355 = vmatpush1.msra.mxu0 %v1296
        %1356 = vmatprep.subr.mxu0 %v1301
        %1357 = vmatpush1.msra.mxu0 %v1300
        %1358 = vmatprep.subr.mxu0 %v1305
        %1359 = vmatpush1.msra.mxu0 %v1304
        %1360 = vmatprep.subr.mxu0 %v1309
        %1361 = vmatpush1.msra.mxu0 %v1308
        %1362 = vmatprep.subr.mxu0 0.0
        %1363 = vmatpush1.msra.mxu0 0.0
        %1364 = vmatprep.subr.mxu0 0.0
        %1365 = vmatpush1.msra.mxu0 0.0
        %1366 = vmatprep.subr.mxu0 0.0
        %1367 = vmatpush1.msra.mxu0 0.0
        %1368 = vmatprep.subr.mxu0 0.0
        %1369 = vmatpush1.msra.mxu0 0.0
        %1370 = vmatprep.subr.mxu0 0.0
        %1371 = vmatpush1.msra.mxu0 0.0
        %1372 = vmatprep.subr.mxu0 0.0
        %1373 = vmatpush1.msra.mxu0 0.0
        %1374 = vmatprep.subr.mxu0 0.0
        %1375 = vmatpush1.msra.mxu0 0.0
        %1376 = vmatprep.subr.mxu0 0.0
        %1377 = vmatpush1.msra.mxu0 0.0
        %1378 = vmatprep.subr.mxu0 0.0
        %1379 = vmatpush1.msra.mxu0 0.0
        %1380 = vmatprep.subr.mxu0 0.0
        %1381 = vmatpush1.msra.mxu0 0.0
        %1382 = vmatprep.subr.mxu0 0.0
        %1383 = vmatpush1.msra.mxu0 0.0
        %1384 = vmatprep.subr.mxu0 0.0
        %1385 = vmatpush1.msra.mxu0 0.0
        %1386 = vmatprep.subr.mxu0 0.0
        %1387 = vmatpush1.msra.mxu0 0.0
        %1388 = vmatprep.subr.mxu0 0.0
        %1389 = vmatpush1.msra.mxu0 0.0
        %1390 = vmatprep.subr.mxu0 0.0
        %1391 = vmatpush1.msra.mxu0 0.0
        %1392 = vmatprep.subr.mxu0 0.0
        %1393 = vmatpush1.msra.mxu0 0.0
        %1394 = vmatprep.subr.mxu0 0.0
        %1395 = vmatpush1.msra.mxu0 0.0
        %1396 = vmatprep.subr.mxu0 0.0
        %1397 = vmatpush1.msra.mxu0 0.0
        %1398 = vmatprep.subr.mxu0 0.0
        %1399 = vmatpush1.msra.mxu0 0.0
        %1400 = vmatprep.subr.mxu0 0.0
        %1401 = vmatpush1.msra.mxu0 0.0
        %1402 = vmatprep.subr.mxu0 0.0
        %1403 = vmatpush1.msra.mxu0 0.0
        %1404 = vmatprep.subr.mxu0 0.0
        %1405 = vmatpush1.msra.mxu0 0.0
        %1406 = vmatprep.subr.mxu0 0.0
        %1407 = vmatpush1.msra.mxu0 0.0
        %1408 = vmatprep.subr.mxu0 0.0
        %1409 = vmatpush1.msra.mxu0 0.0
        %1410 = vmatprep.subr.mxu0 0.0
        %1411 = vmatpush1.msra.mxu0 0.0
        %1412 = vmatprep.subr.mxu0 0.0
        %1413 = vmatpush1.msra.mxu0 0.0
        %1414 = vmatprep.subr.mxu0 0.0
        %1415 = vmatpush1.msra.mxu0 0.0
        %1416 = vmatprep.subr.mxu0 0.0
        %1417 = vmatpush1.msra.mxu0 0.0
        %1418 = vmatprep.mubr.f32.mxu0 0.0
        %1419 = vmatmul.mubr.f32.gmra.mrb[0].mxu0 %v1343
        %v1420 = vpop.f32.mrb[0].mxu0
        %v1421 = vadd.f32 %v1325, %v1420
        %v1422 = vpop.f32.mrb[0].mxu0
        %v1423 = vadd.f32 %v1325, %v1422
        %1424 = vmatprep.mubr.f32.mxu0 0.0
        %1425 = vmatmul.mubr.f32.gmra.mrb[0].mxu0 %v1346
        %v1426 = vpop.f32.mrb[0].mxu0
        %v1427 = vadd.f32 %v1330, %v1426
        %v1428 = vpop.f32.mrb[0].mxu0
        %v1429 = vadd.f32 %v1330, %v1428
        %1430 = vmatprep.mubr.f32.mxu0 0.0
        %1431 = vmatmul.mubr.f32.gmra.mrb[0].mxu0 %v1349
        %v1432 = vpop.f32.mrb[0].mxu0
        %v1433 = vadd.f32 %v1335, %v1432
        %v1434 = vpop.f32.mrb[0].mxu0
        %v1435 = vadd.f32 %v1335, %v1434
        %1436 = vmatprep.mubr.f32.mxu0 0.0
        %1437 = vmatmul.mubr.f32.gmra.mrb[0].mxu0 %v1352
        %v1438 = vpop.f32.mrb[0].mxu0
        %v1439 = vadd.f32 %v1340, %v1438
        %v1440 = vpop.f32.mrb[0].mxu0
        %v1441 = vadd.f32 %v1340, %v1440
        %1442 = vdwg.mxu0
        %1443 = vmatprep.subr.mxu0 %v1299
        %1444 = vmatpush1.msra.mxu0 %v1298
        %1445 = vmatprep.subr.mxu0 %v1303
        %1446 = vmatpush1.msra.mxu0 %v1302
        %1447 = vmatprep.subr.mxu0 %v1307
        %1448 = vmatpush1.msra.mxu0 %v1306
        %1449 = vmatprep.subr.mxu0 %v1311
        %1450 = vmatpush1.msra.mxu0 %v1310
        %1451 = vmatprep.subr.mxu0 0.0
        %1452 = vmatpush1.msra.mxu0 0.0
        %1453 = vmatprep.subr.mxu0 0.0
        %1454 = vmatpush1.msra.mxu0 0.0
        %1455 = vmatprep.subr.mxu0 0.0
        %1456 = vmatpush1.msra.mxu0 0.0
        %1457 = vmatprep.subr.mxu0 0.0
        %1458 = vmatpush1.msra.mxu0 0.0
        %1459 = vmatprep.subr.mxu0 0.0
        %1460 = vmatpush1.msra.mxu0 0.0
        %1461 = vmatprep.subr.mxu0 0.0
        %1462 = vmatpush1.msra.mxu0 0.0
        %1463 = vmatprep.subr.mxu0 0.0
        %1464 = vmatpush1.msra.mxu0 0.0
        %1465 = vmatprep.subr.mxu0 0.0
        %1466 = vmatpush1.msra.mxu0 0.0
        %1467 = vmatprep.subr.mxu0 0.0
        %1468 = vmatpush1.msra.mxu0 0.0
        %1469 = vmatprep.subr.mxu0 0.0
        %1470 = vmatpush1.msra.mxu0 0.0
        %1471 = vmatprep.subr.mxu0 0.0
        %1472 = vmatpush1.msra.mxu0 0.0
        %1473 = vmatprep.subr.mxu0 0.0
        %1474 = vmatpush1.msra.mxu0 0.0
        %1475 = vmatprep.subr.mxu0 0.0
        %1476 = vmatpush1.msra.mxu0 0.0
        %1477 = vmatprep.subr.mxu0 0.0
        %1478 = vmatpush1.msra.mxu0 0.0
        %1479 = vmatprep.subr.mxu0 0.0
        %1480 = vmatpush1.msra.mxu0 0.0
        %1481 = vmatprep.subr.mxu0 0.0
        %1482 = vmatpush1.msra.mxu0 0.0
        %1483 = vmatprep.subr.mxu0 0.0
        %1484 = vmatpush1.msra.mxu0 0.0
        %1485 = vmatprep.subr.mxu0 0.0
        %1486 = vmatpush1.msra.mxu0 0.0
        %1487 = vmatprep.subr.mxu0 0.0
        %1488 = vmatpush1.msra.mxu0 0.0
        %1489 = vmatprep.subr.mxu0 0.0
        %1490 = vmatpush1.msra.mxu0 0.0
        %1491 = vmatprep.subr.mxu0 0.0
        %1492 = vmatpush1.msra.mxu0 0.0
        %1493 = vmatprep.subr.mxu0 0.0
        %1494 = vmatpush1.msra.mxu0 0.0
        %1495 = vmatprep.subr.mxu0 0.0
        %1496 = vmatpush1.msra.mxu0 0.0
        %1497 = vmatprep.subr.mxu0 0.0
        %1498 = vmatpush1.msra.mxu0 0.0
        %1499 = vmatprep.subr.mxu0 0.0
        %1500 = vmatpush1.msra.mxu0 0.0
        %1501 = vmatprep.subr.mxu0 0.0
        %1502 = vmatpush1.msra.mxu0 0.0
        %1503 = vmatprep.subr.mxu0 0.0
        %1504 = vmatpush1.msra.mxu0 0.0
        %1505 = vmatprep.subr.mxu0 0.0
        %1506 = vmatpush1.msra.mxu0 0.0
        %1507 = vmatprep.mubr.f32.mxu0 0.0
        %1508 = vmatmul.mubr.f32.gmra.mrb[0].mxu0 %v1343
        %v1509 = vpop.f32.mrb[0].mxu0
        %v1510 = vadd.f32 %v1325, %v1509
        %v1511 = vpop.f32.mrb[0].mxu0
        %v1512 = vadd.f32 %v1325, %v1511
        %1513 = vmatprep.mubr.f32.mxu0 0.0
        %1514 = vmatmul.mubr.f32.gmra.mrb[0].mxu0 %v1346
        %v1515 = vpop.f32.mrb[0].mxu0
        %v1516 = vadd.f32 %v1330, %v1515
        %v1517 = vpop.f32.mrb[0].mxu0
        %v1518 = vadd.f32 %v1330, %v1517
        %1519 = vmatprep.mubr.f32.mxu0 0.0
        %1520 = vmatmul.mubr.f32.gmra.mrb[0].mxu0 %v1349
        %v1521 = vpop.f32.mrb[0].mxu0
        %v1522 = vadd.f32 %v1335, %v1521
        %v1523 = vpop.f32.mrb[0].mxu0
        %v1524 = vadd.f32 %v1335, %v1523
        %1525 = vmatprep.mubr.f32.mxu0 0.0
        %1526 = vmatmul.mubr.f32.gmra.mrb[0].mxu0 %v1352
        %v1527 = vpop.f32.mrb[0].mxu0
        %v1528 = vadd.f32 %v1340, %v1527
        %v1529 = vpop.f32.mrb[0].mxu0
        %v1530 = vadd.f32 %v1340, %v1529
        %1531 = vdwg.mxu0
        %v1532 = vmax.f32 %v1421, 0.0
        %v1533 = vmax.f32 %v1423, 0.0
        %v1534 = vmax.f32 %v1510, 0.0
        %v1535 = vmax.f32 %v1512, 0.0
        %v1536 = vmax.f32 %v1427, 0.0
        %v1537 = vmax.f32 %v1429, 0.0
        %v1538 = vmax.f32 %v1516, 0.0
        %v1539 = vmax.f32 %v1518, 0.0
        %v1540 = vmax.f32 %v1433, 0.0
        %v1541 = vmax.f32 %v1435, 0.0
        %v1542 = vmax.f32 %v1522, 0.0
        %v1543 = vmax.f32 %v1524, 0.0
        %v1544 = vmax.f32 %v1439, 0.0
        %v1545 = vmax.f32 %v1441, 0.0
        %v1546 = vmax.f32 %v1528, 0.0
        %v1547 = vmax.f32 %v1530, 0.0
        %v1548 = vand.u32 2147483647, %v1421
        %v1549 = vand.u32 2147483647, %v1423
        %v1550 = vand.u32 2147483647, %v1510
        %v1551 = vand.u32 2147483647, %v1512
        %v1552 = vand.u32 2147483647, %v1427
        %v1553 = vand.u32 2147483647, %v1429
        %v1554 = vand.u32 2147483647, %v1516
        %v1555 = vand.u32 2147483647, %v1518
        %v1556 = vand.u32 2147483647, %v1433
        %v1557 = vand.u32 2147483647, %v1435
        %v1558 = vand.u32 2147483647, %v1522
        %v1559 = vand.u32 2147483647, %v1524
        %v1560 = vand.u32 2147483647, %v1439
        %v1561 = vand.u32 2147483647, %v1441
        %v1562 = vand.u32 2147483647, %v1528
        %v1563 = vand.u32 2147483647, %v1530
        %v1564 = vsub.f32 0.0, %v1548
        %v1565 = vsub.f32 0.0, %v1549
        %v1566 = vsub.f32 0.0, %v1550
        %v1567 = vsub.f32 0.0, %v1551
        %v1568 = vsub.f32 0.0, %v1552
        %v1569 = vsub.f32 0.0, %v1553
        %v1570 = vsub.f32 0.0, %v1554
        %v1571 = vsub.f32 0.0, %v1555
        %v1572 = vsub.f32 0.0, %v1556
        %v1573 = vsub.f32 0.0, %v1557
        %v1574 = vsub.f32 0.0, %v1558
        %v1575 = vsub.f32 0.0, %v1559
        %v1576 = vsub.f32 0.0, %v1560
        %v1577 = vsub.f32 0.0, %v1561
        %v1578 = vsub.f32 0.0, %v1562
        %v1579 = vsub.f32 0.0, %v1563
        %v1580 = vmul.f32 %v1564, 1.442695
        %v1581 = vpow.pop %v1580
        %v1582 = vmul.f32 %v1565, 1.442695
        %v1583 = vpow.pop %v1582
        %v1584 = vmul.f32 %v1566, 1.442695
        %v1585 = vpow.pop %v1584
        %v1586 = vmul.f32 %v1567, 1.442695
        %v1587 = vpow.pop %v1586
        %v1588 = vmul.f32 %v1568, 1.442695
        %v1589 = vpow.pop %v1588
        %v1590 = vmul.f32 %v1569, 1.442695
        %v1591 = vpow.pop %v1590
        %v1592 = vmul.f32 %v1570, 1.442695
        %v1593 = vpow.pop %v1592
        %v1594 = vmul.f32 %v1571, 1.442695
        %v1595 = vpow.pop %v1594
        %v1596 = vmul.f32 %v1572, 1.442695
        %v1597 = vpow.pop %v1596
        %v1598 = vmul.f32 %v1573, 1.442695
        %v1599 = vpow.pop %v1598
        %v1600 = vmul.f32 %v1574, 1.442695
        %v1601 = vpow.pop %v1600
        %v1602 = vmul.f32 %v1575, 1.442695
        %v1603 = vpow.pop %v1602
        %v1604 = vmul.f32 %v1576, 1.442695
        %v1605 = vpow.pop %v1604
        %v1606 = vmul.f32 %v1577, 1.442695
        %v1607 = vpow.pop %v1606
        %v1608 = vmul.f32 %v1578, 1.442695
        %v1609 = vpow.pop %v1608
        %v1610 = vmul.f32 %v1579, 1.442695
        %v1611 = vpow.pop %v1610
        %v1612 = vadd.f32 %v1581, 1.0
        %v1613 = vlog2.pop %v1612
        %v1614 = vmul.f32 %v1613, 0.6931472
        %v1615 = vmul.f32 -0.5, %v1581
        %v1616 = vadd.f32 %v1615, 1.0
        %v1617 = vmul.f32 %v1616, %v1581
        %v1618 = vand.u32 2147483647, %v1581
        %vm1619 = vcmp.lt.f32.partialorder %v1618, 0.0004427343
        %v1620 = vsel %vm1619, %v1617, %v1614
        %v1621 = vadd.f32 %v1583, 1.0
        %v1622 = vlog2.pop %v1621
        %v1623 = vmul.f32 %v1622, 0.6931472
        %v1624 = vmul.f32 -0.5, %v1583
        %v1625 = vadd.f32 %v1624, 1.0
        %v1626 = vmul.f32 %v1625, %v1583
        %v1627 = vand.u32 2147483647, %v1583
        %vm1628 = vcmp.lt.f32.partialorder %v1627, 0.0004427343
        %v1629 = vsel %vm1628, %v1626, %v1623
        %v1630 = vadd.f32 %v1585, 1.0
        %v1631 = vlog2.pop %v1630
        %v1632 = vmul.f32 %v1631, 0.6931472
        %v1633 = vmul.f32 -0.5, %v1585
        %v1634 = vadd.f32 %v1633, 1.0
        %v1635 = vmul.f32 %v1634, %v1585
        %v1636 = vand.u32 2147483647, %v1585
        %vm1637 = vcmp.lt.f32.partialorder %v1636, 0.0004427343
        %v1638 = vsel %vm1637, %v1635, %v1632
        %v1639 = vadd.f32 %v1587, 1.0
        %v1640 = vlog2.pop %v1639
        %v1641 = vmul.f32 %v1640, 0.6931472
        %v1642 = vmul.f32 -0.5, %v1587
        %v1643 = vadd.f32 %v1642, 1.0
        %v1644 = vmul.f32 %v1643, %v1587
        %v1645 = vand.u32 2147483647, %v1587
        %vm1646 = vcmp.lt.f32.partialorder %v1645, 0.0004427343
        %v1647 = vsel %vm1646, %v1644, %v1641
        %v1648 = vadd.f32 %v1589, 1.0
        %v1649 = vlog2.pop %v1648
        %v1650 = vmul.f32 %v1649, 0.6931472
        %v1651 = vmul.f32 -0.5, %v1589
        %v1652 = vadd.f32 %v1651, 1.0
        %v1653 = vmul.f32 %v1652, %v1589
        %v1654 = vand.u32 2147483647, %v1589
        %vm1655 = vcmp.lt.f32.partialorder %v1654, 0.0004427343
        %v1656 = vsel %vm1655, %v1653, %v1650
        %v1657 = vadd.f32 %v1591, 1.0
        %v1658 = vlog2.pop %v1657
        %v1659 = vmul.f32 %v1658, 0.6931472
        %v1660 = vmul.f32 -0.5, %v1591
        %v1661 = vadd.f32 %v1660, 1.0
        %v1662 = vmul.f32 %v1661, %v1591
        %v1663 = vand.u32 2147483647, %v1591
        %vm1664 = vcmp.lt.f32.partialorder %v1663, 0.0004427343
        %v1665 = vsel %vm1664, %v1662, %v1659
        %v1666 = vadd.f32 %v1593, 1.0
        %v1667 = vlog2.pop %v1666
        %v1668 = vmul.f32 %v1667, 0.6931472
        %v1669 = vmul.f32 -0.5, %v1593
        %v1670 = vadd.f32 %v1669, 1.0
        %v1671 = vmul.f32 %v1670, %v1593
        %v1672 = vand.u32 2147483647, %v1593
        %vm1673 = vcmp.lt.f32.partialorder %v1672, 0.0004427343
        %v1674 = vsel %vm1673, %v1671, %v1668
        %v1675 = vadd.f32 %v1595, 1.0
        %v1676 = vlog2.pop %v1675
        %v1677 = vmul.f32 %v1676, 0.6931472
        %v1678 = vmul.f32 -0.5, %v1595
        %v1679 = vadd.f32 %v1678, 1.0
        %v1680 = vmul.f32 %v1679, %v1595
        %v1681 = vand.u32 2147483647, %v1595
        %vm1682 = vcmp.lt.f32.partialorder %v1681, 0.0004427343
        %v1683 = vsel %vm1682, %v1680, %v1677
        %v1684 = vadd.f32 %v1597, 1.0
        %v1685 = vlog2.pop %v1684
        %v1686 = vmul.f32 %v1685, 0.6931472
        %v1687 = vmul.f32 -0.5, %v1597
        %v1688 = vadd.f32 %v1687, 1.0
        %v1689 = vmul.f32 %v1688, %v1597
        %v1690 = vand.u32 2147483647, %v1597
        %vm1691 = vcmp.lt.f32.partialorder %v1690, 0.0004427343
        %v1692 = vsel %vm1691, %v1689, %v1686
        %v1693 = vadd.f32 %v1599, 1.0
        %v1694 = vlog2.pop %v1693
        %v1695 = vmul.f32 %v1694, 0.6931472
        %v1696 = vmul.f32 -0.5, %v1599
        %v1697 = vadd.f32 %v1696, 1.0
        %v1698 = vmul.f32 %v1697, %v1599
        %v1699 = vand.u32 2147483647, %v1599
        %vm1700 = vcmp.lt.f32.partialorder %v1699, 0.0004427343
        %v1701 = vsel %vm1700, %v1698, %v1695
        %v1702 = vadd.f32 %v1601, 1.0
        %v1703 = vlog2.pop %v1702
        %v1704 = vmul.f32 %v1703, 0.6931472
        %v1705 = vmul.f32 -0.5, %v1601
        %v1706 = vadd.f32 %v1705, 1.0
        %v1707 = vmul.f32 %v1706, %v1601
        %v1708 = vand.u32 2147483647, %v1601
        %vm1709 = vcmp.lt.f32.partialorder %v1708, 0.0004427343
        %v1710 = vsel %vm1709, %v1707, %v1704
        %v1711 = vadd.f32 %v1603, 1.0
        %v1712 = vlog2.pop %v1711
        %v1713 = vmul.f32 %v1712, 0.6931472
        %v1714 = vmul.f32 -0.5, %v1603
        %v1715 = vadd.f32 %v1714, 1.0
        %v1716 = vmul.f32 %v1715, %v1603
        %v1717 = vand.u32 2147483647, %v1603
        %vm1718 = vcmp.lt.f32.partialorder %v1717, 0.0004427343
        %v1719 = vsel %vm1718, %v1716, %v1713
        %v1720 = vadd.f32 %v1605, 1.0
        %v1721 = vlog2.pop %v1720
        %v1722 = vmul.f32 %v1721, 0.6931472
        %v1723 = vmul.f32 -0.5, %v1605
        %v1724 = vadd.f32 %v1723, 1.0
        %v1725 = vmul.f32 %v1724, %v1605
        %v1726 = vand.u32 2147483647, %v1605
        %vm1727 = vcmp.lt.f32.partialorder %v1726, 0.0004427343
        %v1728 = vsel %vm1727, %v1725, %v1722
        %v1729 = vadd.f32 %v1607, 1.0
        %v1730 = vlog2.pop %v1729
        %v1731 = vmul.f32 %v1730, 0.6931472
        %v1732 = vmul.f32 -0.5, %v1607
        %v1733 = vadd.f32 %v1732, 1.0
        %v1734 = vmul.f32 %v1733, %v1607
        %v1735 = vand.u32 2147483647, %v1607
        %vm1736 = vcmp.lt.f32.partialorder %v1735, 0.0004427343
        %v1737 = vsel %vm1736, %v1734, %v1731
        %v1738 = vadd.f32 %v1609, 1.0
        %v1739 = vlog2.pop %v1738
        %v1740 = vmul.f32 %v1739, 0.6931472
        %v1741 = vmul.f32 -0.5, %v1609
        %v1742 = vadd.f32 %v1741, 1.0
        %v1743 = vmul.f32 %v1742, %v1609
        %v1744 = vand.u32 2147483647, %v1609
        %vm1745 = vcmp.lt.f32.partialorder %v1744, 0.0004427343
        %v1746 = vsel %vm1745, %v1743, %v1740
        %v1747 = vadd.f32 %v1611, 1.0
        %v1748 = vlog2.pop %v1747
        %v1749 = vmul.f32 %v1748, 0.6931472
        %v1750 = vmul.f32 -0.5, %v1611
        %v1751 = vadd.f32 %v1750, 1.0
        %v1752 = vmul.f32 %v1751, %v1611
        %v1753 = vand.u32 2147483647, %v1611
        %vm1754 = vcmp.lt.f32.partialorder %v1753, 0.0004427343
        %v1755 = vsel %vm1754, %v1752, %v1749
        %v1756 = vadd.f32 %v1532, %v1620
        %v1757 = vadd.f32 %v1533, %v1629
        %v1758 = vadd.f32 %v1534, %v1638
        %v1759 = vadd.f32 %v1535, %v1647
        %v1760 = vadd.f32 %v1536, %v1656
        %v1761 = vadd.f32 %v1537, %v1665
        %v1762 = vadd.f32 %v1538, %v1674
        %v1763 = vadd.f32 %v1539, %v1683
        %v1764 = vadd.f32 %v1540, %v1692
        %v1765 = vadd.f32 %v1541, %v1701
        %v1766 = vadd.f32 %v1542, %v1710
        %v1767 = vadd.f32 %v1543, %v1719
        %v1768 = vadd.f32 %v1544, %v1728
        %v1769 = vadd.f32 %v1545, %v1737
        %v1770 = vadd.f32 %v1546, %v1746
        %v1771 = vadd.f32 %v1547, %v1755
        %v1772 = vld [vmem:[%s7] sm:$0xff]
        %v1773 = vld [vmem:[%s7 + $0x8] sm:$0xff]
        %v1774 = vld [vmem:[%s7 + $0x10] sm:$0xff]
        %v1775 = vld [vmem:[%s7 + $0x18] sm:$0xff]
        %1777 = vset.pattern.permute.xlu0 0
        %1778 = vperm.xlu0 %1777, %v1772
        %v1779 = vpop.permute.xlu0 %1778
        %1782 = vset.pattern.permute.xlu0 0
        %1783 = vperm.xlu0 %1782, %v1773
        %v1784 = vpop.permute.xlu0 %1783
        %1787 = vset.pattern.permute.xlu0 0
        %1788 = vperm.xlu0 %1787, %v1774
        %v1789 = vpop.permute.xlu0 %1788
        %1792 = vset.pattern.permute.xlu0 0
        %1793 = vperm.xlu0 %1792, %v1775
        %v1794 = vpop.permute.xlu0 %1793
        %v1796 = vmul.f32 %v1756, %v1779
        %v1797 = vmul.f32 %v1757, %v1779
        %v1798 = vmul.f32 %v1758, %v1779
        %v1799 = vmul.f32 %v1759, %v1779
        %v1800 = vmul.f32 %v1760, %v1784
        %v1801 = vmul.f32 %v1761, %v1784
        %v1802 = vmul.f32 %v1762, %v1784
        %v1803 = vmul.f32 %v1763, %v1784
        %v1804 = vmul.f32 %v1764, %v1789
        %v1805 = vmul.f32 %v1765, %v1789
        %v1806 = vmul.f32 %v1766, %v1789
        %v1807 = vmul.f32 %v1767, %v1789
        %v1808 = vmul.f32 %v1768, %v1794
        %v1809 = vmul.f32 %v1769, %v1794
        %v1810 = vmul.f32 %v1770, %v1794
        %v1811 = vmul.f32 %v1771, %v1794
        %v1812 = vadd.f32 %v1796, %v1800
        %v1813 = vadd.f32 %v1812, %v1804
        %v1814 = vadd.f32 %v1813, %v1808
        %v1815 = vrot.slane %v1814, 4
        %v1816 = vadd.f32 %v1814, %v1815
        %v1817 = vrot.slane %v1816, 2
        %v1818 = vadd.f32 %v1816, %v1817
        %v1819 = vrot.slane %v1818, 1
        %v1820 = vadd.f32 %v1818, %v1819
        %v1821 = vadd.f32 %v1797, %v1801
        %v1822 = vadd.f32 %v1821, %v1805
        %v1823 = vadd.f32 %v1822, %v1809
        %v1824 = vrot.slane %v1823, 4
        %v1825 = vadd.f32 %v1823, %v1824
        %v1826 = vrot.slane %v1825, 2
        %v1827 = vadd.f32 %v1825, %v1826
        %v1828 = vrot.slane %v1827, 1
        %v1829 = vadd.f32 %v1827, %v1828
        %v1830 = vadd.f32 %v1798, %v1802
        %v1831 = vadd.f32 %v1830, %v1806
        %v1832 = vadd.f32 %v1831, %v1810
        %v1833 = vrot.slane %v1832, 4
        %v1834 = vadd.f32 %v1832, %v1833
        %v1835 = vrot.slane %v1834, 2
        %v1836 = vadd.f32 %v1834, %v1835
        %v1837 = vrot.slane %v1836, 1
        %v1838 = vadd.f32 %v1836, %v1837
        %v1839 = vadd.f32 %v1799, %v1803
        %v1840 = vadd.f32 %v1839, %v1807
        %v1841 = vadd.f32 %v1840, %v1811
        %v1842 = vrot.slane %v1841, 4
        %v1843 = vadd.f32 %v1841, %v1842
        %v1844 = vrot.slane %v1843, 2
        %v1845 = vadd.f32 %v1843, %v1844
        %v1846 = vrot.slane %v1845, 1
        %v1847 = vadd.f32 %v1845, %v1846
        %v1848 = vld [vmem:[#allocation2] sm:$0x1]
        %1850 = vset.pattern.permute.xlu0 0
        %1851 = vperm.xlu0 %1850, %v1848
        %v1852 = vpop.permute.xlu0 %1851
        %v1854 = vlaneseq
        %v1855 = vshrl.u32 %v1854, 7
        %v1856 = vsub.s32 0, %v1855
        %v1857 = vrot.slane %v1852, %v1856
        %v1858 = vadd.f32 %v1820, %v1857
        %v1859 = vadd.f32 %v1829, %v1857
        %v1860 = vadd.f32 %v1838, %v1857
        %v1861 = vadd.f32 %v1847, %v1857
        %v1866 = vcombine.low %v1858, %v1859
        %v1867 = vcombine.low %v1860, %v1861
        %v1869 = vunpack.c.l.s4 1966171168
        %v1870 = vunpack.c.0.s8 %v1869
        %v1871 = vlaneseq
        %v1872 = vshrl.u32 %v1871, 7
        %v1873 = vsub.s32 %v1870, %v1872
        %v1874 = vrot.slane %v1866, %v1873
        %v1876 = vunpack.c.l.s4 1966171168
        %v1877 = vunpack.c.0.s8 %v1876
        %v1878 = vlaneseq
        %v1879 = vshrl.u32 %v1878, 7
        %v1880 = vsub.s32 %v1877, %v1879
        %v1881 = vrot.slane %v1867, %v1880
        %v1882 = vcombine.low %v1874, %v1881
        %v1884 = vunpack.c.l.s4 1966171168
        %v1885 = vunpack.c.0.s8 %v1884
        %v1886 = vlaneseq
        %v1887 = vshrl.u32 %v1886, 7
        %v1888 = vsub.s32 %v1885, %v1887
        %v1889 = vrot.slane %v1882, %v1888
        %v1891 = vlaneseq
        %vm1892 = vcmp.ge.s32.totalorder %v1891, 0
        %vm1893 = vcmp.lt.s32.totalorder %v1891, 512
        %vm1894 = vmand %vm1892, %vm1893
        %1895 = vst.msk [vmem:[%s328] sm:$0xf] %vm1894, %v1889
        %s1896 = sand.u32 %s227, 1
        %s1897 = scalar_lea.sflag [#allocation4], %s1896
        %s1898 = sand.u32 %s227, 1
        %s1899 = smul.addr %s1898, 4
        %s1900 = scalar_lea.vmem [#allocation3], %s1899
        // Predicated region
        $region57: #{tpu_custom_call.1} parent=55 // pred_check
          %p1901 = pneg %p237
        $region58: #{tpu_custom_call.1} parent=55 // pred_check_branch
          %1903 = sbr.rel (%p1901) target = $region60
        $region59: #{tpu_custom_call.1} parent=55 // pred_region
          %s1904 = smul.u32 4, %s25
          %s1906 = ssub.s32 64, 64
          %1907 = vsyncadd %s1897, %s1906
          %s1908 = smul.addr %s1904, 16
          %s1909 = scalar_lea.hbm %s9, %s1908
          %s1911 = sshll.u32 %s1900, 4
          %s1912 = int_to_ptr.vmem [resolvable:$true] %s1911
          %1914 = dma.vmem_to_hbm [thread:$0]  %s1912, 64, %s1909, %s1897
        $region60: #{tpu_custom_call.1} parent=55 // pred_fallthru
          _
      $region56: #{tpu_custom_call.1} parent=5 // pred_fallthru
        _
      %p1915 = scmp.le.s32.totalorder 2, %s20
      // Predicated region
      $region61: #{tpu_custom_call.1} parent=5 // pred_check
        %p1916 = pneg %p1915
      $region62: #{tpu_custom_call.1} parent=5 // pred_check_branch
        %1918 = sbr.rel (%p1916) target = $region64
      $region63: #{tpu_custom_call.1} parent=5 // pred_region
        %s1919 = ssub.s32 %s20, 2
        // Predicated region
        $region65: #{tpu_custom_call.1} parent=63 // pred_check
          %p1920 = pneg %p243
        $region66: #{tpu_custom_call.1} parent=63 // pred_check_branch
          %1922 = sbr.rel (%p1920) target = $region68
        $region67: #{tpu_custom_call.1} parent=63 // pred_region
          %s1923 = sand.u32 %s228, 1
          %s1924 = scalar_lea.sflag [#allocation4], %s1923
          %s1925 = sand.u32 %s228, 1
          %s1926 = smul.addr %s1925, 4
          %s1927 = scalar_lea.vmem [#allocation3], %s1926
          %1928 = dma.done %s1924, 64
        $region68: #{tpu_custom_call.1} parent=63 // pred_fallthru
          _
      $region64: #{tpu_custom_call.1} parent=5 // pred_fallthru
        _
    $region6: #{tpu_custom_call.1} parent=1 // loop_footer
      %s24 = sadd.s32 1, %s20
    $region7: #{tpu_custom_call.1} parent=1 // loop_footer_branch
      %19 = sbr.rel target = $region3
    $region8: #{tpu_custom_call.1} parent=1 // loop_exit
      _
    %1929 = vsyncpa [#allocation4], 1
    %s1930 = scalar_lea.sflag [#allocation4], 1
    %1931 = vsyncpa %s1930, 1

</llo_original>
